<compile_context>
chip_gen: v5e
topology: v5e:2x2
jax: 0.10.0
libtpu: 0.0.40
codegen_flags: <defaults>
</compile_context>

<pallas_src>
import jax
import jax.numpy as jnp
from jax.experimental import pallas as pl
from jax.experimental.pallas import tpu as pltpu

LEAKY_SLOPE = 0.01        # nn.LeakyReLU() default
HIDDEN_EDGE = 16          # edge_scoring hidden width (Linear(agg_nodes, 16))


def _tcg_kernel(x_ref, edge_ref, ws_ref, elr_ref, mlp_ref, out_ref):
    T, B, S, N = x_ref.shape
    NN = N * N
    H = (mlp_ref.shape[0] - 1) // 4

    # ---- features: mean over batch, center each node series over S -------------
    x = x_ref[...]                                            # (T, B, S, N)
    feat = jnp.mean(x, axis=1)                                # (T, S, N)
    feat_c = feat - jnp.mean(feat, axis=1, keepdims=True)     # (T, S, N)

    # ---- lane-flattened Pearson correlation for all T at once ------------------
    # E_left[i, i*N+j] = 1 and E_right[j, i*N+j] = 1, so
    #   (f @ E_left)[.., i*N+j]  = f[.., i]
    #   (f @ E_right)[.., i*N+j] = f[.., j]
    # which lets the Gram matrix come out already flat along lanes.
    e_left = elr_ref[0]                                       # (N, NN)
    e_right = elr_ref[1]                                      # (N, NN)

    f2 = feat_c.reshape(T * S, N)                             # leading-dim fold (layout no-op)
    p_l = jnp.dot(f2, e_left, preferred_element_type=jnp.float32)    # (T*S, NN)
    p_r = jnp.dot(f2, e_right, preferred_element_type=jnp.float32)   # (T*S, NN)
    prod = (p_l * p_r).reshape(T, S, NN)                      # leading-dim unfold (layout no-op)
    numer = jnp.sum(prod, axis=1)                             # (T, NN)

    sq = jnp.sum(feat_c * feat_c, axis=1)                     # (T, N)
    sq_l = jnp.dot(sq, e_left, preferred_element_type=jnp.float32)   # (T, NN)
    sq_r = jnp.dot(sq, e_right, preferred_element_type=jnp.float32)  # (T, NN)
    inv_denom = jax.lax.rsqrt(sq_l * sq_r + 1e-8)             # EUP slot, no VPU divide
    corr = jnp.clip(jnp.abs(numer) * inv_denom, 0.0, 1.0)     # (T, NN)

    # ---- per-t learned parameter edges: row 0 -> now, rows 1.. -> lag ----------
    edge = edge_ref[...]                                      # (4, NN)
    es_now = edge[0:1]
    es_lag = edge[1:2]
    prior = edge[2:3]
    offdiag = edge[3:4]
    t_idx = jax.lax.broadcasted_iota(jnp.int32, (T, NN), 0)
    param = jnp.where(t_idx == 0, es_now, es_lag)             # (T, NN)

    # ---- edge_scoring MLP: Linear(2,16) -> LeakyReLU -> Linear(16,1) -> Sigmoid
    # Running accumulator over H (no (H, T, NN) intermediate is materialized).
    # mlp_ref layout: [w1[:,0] | w1[:,1] | b1 | w2 | b2]  (4H+1 scalars in SMEM)
    acc = jnp.zeros((T, NN), jnp.float32)
    for h in range(H):                                        # static unroll, H = 16
        z = corr * mlp_ref[h] + param * mlp_ref[H + h] + mlp_ref[2 * H + h]
        z = jnp.maximum(z, LEAKY_SLOPE * z)                   # LeakyReLU: mul + max
        acc = acc + mlp_ref[3 * H + h] * z
    score = jax.nn.sigmoid(acc + mlp_ref[4 * H])              # (T, NN)

    # ---- blend with prior, apply time weights, reduce to (adj_now, adj_lag) ----
    weighted = (0.7 * score + 0.3 * jax.nn.sigmoid(prior)) * ws_ref[...]   # (T, NN)
    adj_now = weighted[0:1]                                   # (1, NN)
    if T > 1:
        total = jnp.sum(weighted, axis=0, keepdims=True)      # vectorized t-reduce
        adj_lag = (total - adj_now) * (1.0 / (T - 1))         # mean over t >= 1
    else:
        adj_lag = jnp.zeros((1, NN), jnp.float32)

    # Single lane-dense store: (1, 2*N*N) == exactly 128 lanes at N = 8.
    out_ref[...] = jnp.concatenate([adj_now * offdiag, adj_lag * offdiag], axis=1)


def temporal_causal_graph_forward(x, edge_score_now, edge_score_lag, prior_adj,
                                  weights_schedule, w1, b1, w2, b2):
    """Returns (adj_now, adj_lag), both (N, N) float32."""
    T, B, S, N = x.shape
    NN = N * N
    H = w1.shape[0]

    # ---- host-side layout plumbing (tiny constants / reshapes, free) -----------
    i_idx = jnp.arange(NN) // N
    j_idx = jnp.arange(NN) % N
    e_left = (jnp.arange(N)[:, None] == i_idx[None, :]).astype(jnp.float32)   # (N, NN)
    e_right = (jnp.arange(N)[:, None] == j_idx[None, :]).astype(jnp.float32)  # (N, NN)
    elr = jnp.stack([e_left, e_right], axis=0)                                # (2, N, NN)

    offdiag = (i_idx != j_idx).astype(jnp.float32)[None, :]                   # (1, NN)
    edge_slab = jnp.concatenate(
        [edge_score_now.reshape(1, NN).astype(jnp.float32),
         edge_score_lag.reshape(1, NN).astype(jnp.float32),
         prior_adj.reshape(1, NN).astype(jnp.float32),
         offdiag], axis=0)                                                    # (4, NN)

    ws_col = weights_schedule[:T].astype(jnp.float32).reshape(T, 1)           # (T, 1)
    mlp_flat = jnp.concatenate(
        [w1[:, 0], w1[:, 1], b1, w2, b2]).astype(jnp.float32)                 # (4H+1,)

    vmem = pl.BlockSpec(memory_space=pltpu.MemorySpace.VMEM)
    smem = pl.BlockSpec(memory_space=pltpu.MemorySpace.SMEM)

    out = pl.pallas_call(
        _tcg_kernel,
        out_shape=jax.ShapeDtypeStruct((1, 2 * NN), jnp.float32),
        in_specs=[vmem,   # x
                  vmem,   # packed edge slab [es_now, es_lag, prior, offdiag]
                  vmem,   # weights_schedule[:T] as a (T,1) column
                  vmem,   # packed one-hot expansion matrices (2, N, NN)
                  smem],  # flat MLP params (4H+1,)
        out_specs=vmem,
    )(x.astype(jnp.float32), edge_slab, ws_col, elr, mlp_flat)

    out = out.reshape(2, N, N)
    return out[0], out[1]


def _reference_forward(x, edge_score_now, edge_score_lag, prior_adj,
                       weights_schedule, w1, b1, w2, b2):
    """Pure-JAX mirror of the PyTorch forward for verification."""
    T, B, S, N = x.shape
    eye = jnp.eye(N, dtype=jnp.float32)
    outs = []
    for t in range(T):
        feat = x[t].mean(axis=0)
        feat_c = feat - feat.mean(axis=0, keepdims=True)
        numer = feat_c.T @ feat_c
        sq = jnp.sum(feat_c ** 2, axis=0)
        corr = jnp.abs(numer / jnp.sqrt(sq[:, None] * sq[None, :] + 1e-8))
        corr = jnp.clip(corr * (1.0 - eye), 0.0, 1.0)
        param = edge_score_now if t == 0 else edge_score_lag
        ef = jnp.stack([corr, param], axis=-1)                       # (N, N, 2)
        h = jnp.einsum('ijk,hk->ijh', ef, w1) + b1
        h = jnp.where(h >= 0.0, h, LEAKY_SLOPE * h)
        score = jax.nn.sigmoid(jnp.einsum('ijh,h->ij', h, w2) + b2[0])
        final = score * (1.0 - eye)
        final = 0.7 * final + 0.3 * jax.nn.sigmoid(prior_adj)
        outs.append(final * weights_schedule[t])
    adj_now = outs[0] * (1.0 - eye)
    adj_lag = (jnp.mean(jnp.stack(outs[1:]), axis=0) * (1.0 - eye)
               if T > 1 else jnp.zeros_like(adj_now))
    return adj_now, adj_lag


if __name__ == "__main__":
    # Small, module-consistent shapes.  S must be a multiple of 8 (see header).
    num_nodes = 8
    hidden_dim = 32      # present in the module but unused on this forward path
    time_steps = 10
    T, B, S = 4, 2, 16   # T <= time_steps

    key = jax.random.PRNGKey(0)
    k_x, k_now, k_lag, k_w1, k_b1, k_w2, k_b2 = jax.random.split(key, 7)

    x = jax.random.normal(k_x, (T, B, S, num_nodes), dtype=jnp.float32)

    # Parameters (deterministic synthetic init, matching __init__ shapes).
    edge_score_now = 0.1 * jax.random.normal(k_now, (num_nodes, num_nodes), dtype=jnp.float32)
    edge_score_lag = 0.1 * jax.random.normal(k_lag, (num_nodes, num_nodes), dtype=jnp.float32)
    prior_adj = jnp.zeros((num_nodes, num_nodes), dtype=jnp.float32)
    # edge_scoring: Linear(2, 16) -> LeakyReLU -> Linear(16, 1) -> Sigmoid
    w1 = 0.5 * jax.random.normal(k_w1, (HIDDEN_EDGE, 2), dtype=jnp.float32)
    b1 = 0.1 * jax.random.normal(k_b1, (HIDDEN_EDGE,), dtype=jnp.float32)
    w2 = 0.5 * jax.random.normal(k_w2, (HIDDEN_EDGE,), dtype=jnp.float32)
    b2 = 0.1 * jax.random.normal(k_b2, (1,), dtype=jnp.float32)

    weights_schedule = jnp.linspace(1.0, 0.1, time_steps).astype(jnp.float32)

    fwd = jax.jit(temporal_causal_graph_forward)
    adj_now, adj_lag = fwd(x, edge_score_now, edge_score_lag, prior_adj,
                           weights_schedule, w1, b1, w2, b2)
    jax.block_until_ready((adj_now, adj_lag))

    ref_now, ref_lag = _reference_forward(x, edge_score_now, edge_score_lag, prior_adj,
                                          weights_schedule, w1, b1, w2, b2)
    assert jnp.allclose(adj_now, ref_now, atol=1e-3, rtol=1e-3)
    assert jnp.allclose(adj_lag, ref_lag, atol=1e-3, rtol=1e-3)

    # TODO(synk): use_attention=True path (MultiheadAttention), GATv2Conv,
    # node_projection / edge_projection, and hard_concrete_sigmoid are not on
    # this forward's hot path and are not implemented.
    print("KERNEL_OK")
</pallas_src>

<mosaic_0001>
module attributes {stable_mosaic.version = 11 : i64} {
  func.func @_tcg_kernel(%arg0: memref<4x2x16x8xf32, #tpu.memory_space<vmem>>, %arg1: memref<4x64xf32, #tpu.memory_space<vmem>>, %arg2: memref<4x1xf32, #tpu.memory_space<vmem>>, %arg3: memref<2x8x64xf32, #tpu.memory_space<vmem>>, %arg4: memref<65xf32, #tpu.memory_space<smem>>, %arg5: memref<1x128xf32, #tpu.memory_space<vmem>>) attributes {dimension_semantics = [], scalar_prefetch = 0 : i64, scratch_operands = 0 : i64, tpu.core_type = #tpu.core_type<tc>} {
    %c0 = arith.constant 0 : index
    %c0_0 = arith.constant 0 : index
    %c0_1 = arith.constant 0 : index
    %c0_2 = arith.constant 0 : index
    %0 = vector.load %arg0[%c0, %c0_0, %c0_1, %c0_2] : memref<4x2x16x8xf32, #tpu.memory_space<vmem>>, vector<4x2x16x8xf32>
    %cst = arith.constant dense<0.000000e+00> : vector<4x16x8xf32>
    %1 = vector.multi_reduction <add>, %0, %cst [1] : vector<4x2x16x8xf32> to vector<4x16x8xf32>
    %cst_3 = arith.constant 2.000000e+00 : f32
    %2 = vector.broadcast %cst_3 : f32 to vector<4x16x8xf32>
    %3 = arith.divf %1, %2 : vector<4x16x8xf32>
    %cst_4 = arith.constant dense<0.000000e+00> : vector<4x8xf32>
    %4 = vector.multi_reduction <add>, %3, %cst_4 [1] : vector<4x16x8xf32> to vector<4x8xf32>
    %5 = vector.shape_cast %4 : vector<4x8xf32> to vector<4x1x8xf32>
    %cst_5 = arith.constant 1.600000e+01 : f32
    %6 = vector.broadcast %cst_5 : f32 to vector<4x1x8xf32>
    %7 = arith.divf %5, %6 : vector<4x1x8xf32>
    %8 = vector.broadcast %7 : vector<4x1x8xf32> to vector<4x16x8xf32>
    %9 = arith.subf %3, %8 : vector<4x16x8xf32>
    %c0_6 = arith.constant 0 : index
    %c0_7 = arith.constant 0 : index
    %c0_8 = arith.constant 0 : index
    %10 = vector.load %arg3[%c0_6, %c0_7, %c0_8] : memref<2x8x64xf32, #tpu.memory_space<vmem>>, vector<1x8x64xf32>
    %11 = vector.shape_cast %10 : vector<1x8x64xf32> to vector<8x64xf32>
    %c1 = arith.constant 1 : index
    %c0_9 = arith.constant 0 : index
    %c0_10 = arith.constant 0 : index
    %12 = vector.load %arg3[%c1, %c0_9, %c0_10] : memref<2x8x64xf32, #tpu.memory_space<vmem>>, vector<1x8x64xf32>
    %13 = vector.shape_cast %12 : vector<1x8x64xf32> to vector<8x64xf32>
    %14 = vector.shape_cast %9 : vector<4x16x8xf32> to vector<64x8xf32>
    %cst_11 = arith.constant dense<0.000000e+00> : vector<64x64xf32>
    %15 = tpu.matmul %14, %11, %cst_11 {dimension_numbers = #tpu.dot_dimension_numbers<[1], [0], [0], [1], [0, 0, 1, 1], [], []>} : vector<64x8xf32>, vector<8x64xf32>, vector<64x64xf32> -> vector<64x64xf32>
    %cst_12 = arith.constant dense<0.000000e+00> : vector<64x64xf32>
    %16 = tpu.matmul %14, %13, %cst_12 {dimension_numbers = #tpu.dot_dimension_numbers<[1], [0], [0], [1], [0, 0, 1, 1], [], []>} : vector<64x8xf32>, vector<8x64xf32>, vector<64x64xf32> -> vector<64x64xf32>
    %17 = arith.mulf %15, %16 : vector<64x64xf32>
    %18 = vector.shape_cast %17 : vector<64x64xf32> to vector<4x16x64xf32>
    %cst_13 = arith.constant dense<0.000000e+00> : vector<4x64xf32>
    %19 = vector.multi_reduction <add>, %18, %cst_13 [1] : vector<4x16x64xf32> to vector<4x64xf32>
    %20 = arith.mulf %9, %9 : vector<4x16x8xf32>
    %cst_14 = arith.constant dense<0.000000e+00> : vector<4x8xf32>
    %21 = vector.multi_reduction <add>, %20, %cst_14 [1] : vector<4x16x8xf32> to vector<4x8xf32>
    %cst_15 = arith.constant dense<0.000000e+00> : vector<4x64xf32>
    %22 = tpu.matmul %21, %11, %cst_15 {dimension_numbers = #tpu.dot_dimension_numbers<[1], [0], [0], [1], [0, 0, 1, 1], [], []>} : vector<4x8xf32>, vector<8x64xf32>, vector<4x64xf32> -> vector<4x64xf32>
    %cst_16 = arith.constant dense<0.000000e+00> : vector<4x64xf32>
    %23 = tpu.matmul %21, %13, %cst_16 {dimension_numbers = #tpu.dot_dimension_numbers<[1], [0], [0], [1], [0, 0, 1, 1], [], []>} : vector<4x8xf32>, vector<8x64xf32>, vector<4x64xf32> -> vector<4x64xf32>
    %24 = arith.mulf %22, %23 : vector<4x64xf32>
    %cst_17 = arith.constant 9.99999993E-9 : f32
    %25 = vector.broadcast %cst_17 : f32 to vector<4x64xf32>
    %26 = arith.addf %24, %25 : vector<4x64xf32>
    %27 = math.rsqrt %26 : vector<4x64xf32>
    %28 = math.absf %19 : vector<4x64xf32>
    %29 = arith.mulf %28, %27 : vector<4x64xf32>
    %cst_18 = arith.constant 0.000000e+00 : f32
    %cst_19 = arith.constant 1.000000e+00 : f32
    %30 = vector.broadcast %cst_18 : f32 to vector<4x64xf32>
    %31 = arith.maximumf %30, %29 : vector<4x64xf32>
    %32 = vector.broadcast %cst_19 : f32 to vector<4x64xf32>
    %33 = arith.minimumf %32, %31 : vector<4x64xf32>
    %c0_20 = arith.constant 0 : index
    %c0_21 = arith.constant 0 : index
    %34 = vector.load %arg1[%c0_20, %c0_21] : memref<4x64xf32, #tpu.memory_space<vmem>>, vector<4x64xf32>
    %35 = vector.extract_strided_slice %34 {offsets = [0, 0], sizes = [1, 64], strides = [1, 1]} : vector<4x64xf32> to vector<1x64xf32>
    %36 = vector.extract_strided_slice %34 {offsets = [1, 0], sizes = [1, 64], strides = [1, 1]} : vector<4x64xf32> to vector<1x64xf32>
    %37 = vector.extract_strided_slice %34 {offsets = [2, 0], sizes = [1, 64], strides = [1, 1]} : vector<4x64xf32> to vector<1x64xf32>
    %38 = vector.extract_strided_slice %34 {offsets = [3, 0], sizes = [1, 64], strides = [1, 1]} : vector<4x64xf32> to vector<1x64xf32>
    %39 = tpu.iota {dimensions = array<i32: 0>} : vector<4x64xi32>
    %c0_i32 = arith.constant 0 : i32
    %40 = vector.broadcast %c0_i32 : i32 to vector<4x64xi32>
    %41 = arith.cmpi eq, %39, %40 : vector<4x64xi32>
    %42 = vector.shape_cast %35 : vector<1x64xf32> to vector<1x64xf32>
    %43 = vector.broadcast %42 : vector<1x64xf32> to vector<4x64xf32>
    %44 = vector.shape_cast %36 : vector<1x64xf32> to vector<1x64xf32>
    %45 = vector.broadcast %44 : vector<1x64xf32> to vector<4x64xf32>
    %46 = arith.select %41, %43, %45 : vector<4x64xi1>, vector<4x64xf32>
    %cst_22 = arith.constant 0.000000e+00 : f32
    %47 = vector.broadcast %cst_22 : f32 to vector<4x64xf32>
    %c0_23 = arith.constant 0 : index
    %48 = memref.load %arg4[%c0_23] : memref<65xf32, #tpu.memory_space<smem>>
    %49 = vector.broadcast %48 : f32 to vector<4x64xf32>
    %50 = arith.mulf %33, %49 : vector<4x64xf32>
    %c16 = arith.constant 16 : index
    %51 = memref.load %arg4[%c16] : memref<65xf32, #tpu.memory_space<smem>>
    %52 = vector.broadcast %51 : f32 to vector<4x64xf32>
    %53 = arith.mulf %46, %52 : vector<4x64xf32>
    %54 = arith.addf %50, %53 : vector<4x64xf32>
    %c32 = arith.constant 32 : index
    %55 = memref.load %arg4[%c32] : memref<65xf32, #tpu.memory_space<smem>>
    %56 = vector.broadcast %55 : f32 to vector<4x64xf32>
    %57 = arith.addf %54, %56 : vector<4x64xf32>
    %cst_24 = arith.constant 0.00999999977 : f32
    %58 = vector.broadcast %cst_24 : f32 to vector<4x64xf32>
    %59 = arith.mulf %58, %57 : vector<4x64xf32>
    %60 = arith.maximumf %57, %59 : vector<4x64xf32>
    %c48 = arith.constant 48 : index
    %61 = memref.load %arg4[%c48] : memref<65xf32, #tpu.memory_space<smem>>
    %62 = vector.broadcast %61 : f32 to vector<4x64xf32>
    %63 = arith.mulf %62, %60 : vector<4x64xf32>
    %64 = arith.addf %47, %63 : vector<4x64xf32>
    %c1_25 = arith.constant 1 : index
    %65 = memref.load %arg4[%c1_25] : memref<65xf32, #tpu.memory_space<smem>>
    %66 = vector.broadcast %65 : f32 to vector<4x64xf32>
    %67 = arith.mulf %33, %66 : vector<4x64xf32>
    %c17 = arith.constant 17 : index
    %68 = memref.load %arg4[%c17] : memref<65xf32, #tpu.memory_space<smem>>
    %69 = vector.broadcast %68 : f32 to vector<4x64xf32>
    %70 = arith.mulf %46, %69 : vector<4x64xf32>
    %71 = arith.addf %67, %70 : vector<4x64xf32>
    %c33 = arith.constant 33 : index
    %72 = memref.load %arg4[%c33] : memref<65xf32, #tpu.memory_space<smem>>
    %73 = vector.broadcast %72 : f32 to vector<4x64xf32>
    %74 = arith.addf %71, %73 : vector<4x64xf32>
    %cst_26 = arith.constant 0.00999999977 : f32
    %75 = vector.broadcast %cst_26 : f32 to vector<4x64xf32>
    %76 = arith.mulf %75, %74 : vector<4x64xf32>
    %77 = arith.maximumf %74, %76 : vector<4x64xf32>
    %c49 = arith.constant 49 : index
    %78 = memref.load %arg4[%c49] : memref<65xf32, #tpu.memory_space<smem>>
    %79 = vector.broadcast %78 : f32 to vector<4x64xf32>
    %80 = arith.mulf %79, %77 : vector<4x64xf32>
    %81 = arith.addf %64, %80 : vector<4x64xf32>
    %c2 = arith.constant 2 : index
    %82 = memref.load %arg4[%c2] : memref<65xf32, #tpu.memory_space<smem>>
    %83 = vector.broadcast %82 : f32 to vector<4x64xf32>
    %84 = arith.mulf %33, %83 : vector<4x64xf32>
    %c18 = arith.constant 18 : index
    %85 = memref.load %arg4[%c18] : memref<65xf32, #tpu.memory_space<smem>>
    %86 = vector.broadcast %85 : f32 to vector<4x64xf32>
    %87 = arith.mulf %46, %86 : vector<4x64xf32>
    %88 = arith.addf %84, %87 : vector<4x64xf32>
    %c34 = arith.constant 34 : index
    %89 = memref.load %arg4[%c34] : memref<65xf32, #tpu.memory_space<smem>>
    %90 = vector.broadcast %89 : f32 to vector<4x64xf32>
    %91 = arith.addf %88, %90 : vector<4x64xf32>
    %cst_27 = arith.constant 0.00999999977 : f32
    %92 = vector.broadcast %cst_27 : f32 to vector<4x64xf32>
    %93 = arith.mulf %92, %91 : vector<4x64xf32>
    %94 = arith.maximumf %91, %93 : vector<4x64xf32>
    %c50 = arith.constant 50 : index
    %95 = memref.load %arg4[%c50] : memref<65xf32, #tpu.memory_space<smem>>
    %96 = vector.broadcast %95 : f32 to vector<4x64xf32>
    %97 = arith.mulf %96, %94 : vector<4x64xf32>
    %98 = arith.addf %81, %97 : vector<4x64xf32>
    %c3 = arith.constant 3 : index
    %99 = memref.load %arg4[%c3] : memref<65xf32, #tpu.memory_space<smem>>
    %100 = vector.broadcast %99 : f32 to vector<4x64xf32>
    %101 = arith.mulf %33, %100 : vector<4x64xf32>
    %c19 = arith.constant 19 : index
    %102 = memref.load %arg4[%c19] : memref<65xf32, #tpu.memory_space<smem>>
    %103 = vector.broadcast %102 : f32 to vector<4x64xf32>
    %104 = arith.mulf %46, %103 : vector<4x64xf32>
    %105 = arith.addf %101, %104 : vector<4x64xf32>
    %c35 = arith.constant 35 : index
    %106 = memref.load %arg4[%c35] : memref<65xf32, #tpu.memory_space<smem>>
    %107 = vector.broadcast %106 : f32 to vector<4x64xf32>
    %108 = arith.addf %105, %107 : vector<4x64xf32>
    %cst_28 = arith.constant 0.00999999977 : f32
    %109 = vector.broadcast %cst_28 : f32 to vector<4x64xf32>
    %110 = arith.mulf %109, %108 : vector<4x64xf32>
    %111 = arith.maximumf %108, %110 : vector<4x64xf32>
    %c51 = arith.constant 51 : index
    %112 = memref.load %arg4[%c51] : memref<65xf32, #tpu.memory_space<smem>>
    %113 = vector.broadcast %112 : f32 to vector<4x64xf32>
    %114 = arith.mulf %113, %111 : vector<4x64xf32>
    %115 = arith.addf %98, %114 : vector<4x64xf32>
    %c4 = arith.constant 4 : index
    %116 = memref.load %arg4[%c4] : memref<65xf32, #tpu.memory_space<smem>>
    %117 = vector.broadcast %116 : f32 to vector<4x64xf32>
    %118 = arith.mulf %33, %117 : vector<4x64xf32>
    %c20 = arith.constant 20 : index
    %119 = memref.load %arg4[%c20] : memref<65xf32, #tpu.memory_space<smem>>
    %120 = vector.broadcast %119 : f32 to vector<4x64xf32>
    %121 = arith.mulf %46, %120 : vector<4x64xf32>
    %122 = arith.addf %118, %121 : vector<4x64xf32>
    %c36 = arith.constant 36 : index
    %123 = memref.load %arg4[%c36] : memref<65xf32, #tpu.memory_space<smem>>
    %124 = vector.broadcast %123 : f32 to vector<4x64xf32>
    %125 = arith.addf %122, %124 : vector<4x64xf32>
    %cst_29 = arith.constant 0.00999999977 : f32
    %126 = vector.broadcast %cst_29 : f32 to vector<4x64xf32>
    %127 = arith.mulf %126, %125 : vector<4x64xf32>
    %128 = arith.maximumf %125, %127 : vector<4x64xf32>
    %c52 = arith.constant 52 : index
    %129 = memref.load %arg4[%c52] : memref<65xf32, #tpu.memory_space<smem>>
    %130 = vector.broadcast %129 : f32 to vector<4x64xf32>
    %131 = arith.mulf %130, %128 : vector<4x64xf32>
    %132 = arith.addf %115, %131 : vector<4x64xf32>
    %c5 = arith.constant 5 : index
    %133 = memref.load %arg4[%c5] : memref<65xf32, #tpu.memory_space<smem>>
    %134 = vector.broadcast %133 : f32 to vector<4x64xf32>
    %135 = arith.mulf %33, %134 : vector<4x64xf32>
    %c21 = arith.constant 21 : index
    %136 = memref.load %arg4[%c21] : memref<65xf32, #tpu.memory_space<smem>>
    %137 = vector.broadcast %136 : f32 to vector<4x64xf32>
    %138 = arith.mulf %46, %137 : vector<4x64xf32>
    %139 = arith.addf %135, %138 : vector<4x64xf32>
    %c37 = arith.constant 37 : index
    %140 = memref.load %arg4[%c37] : memref<65xf32, #tpu.memory_space<smem>>
    %141 = vector.broadcast %140 : f32 to vector<4x64xf32>
    %142 = arith.addf %139, %141 : vector<4x64xf32>
    %cst_30 = arith.constant 0.00999999977 : f32
    %143 = vector.broadcast %cst_30 : f32 to vector<4x64xf32>
    %144 = arith.mulf %143, %142 : vector<4x64xf32>
    %145 = arith.maximumf %142, %144 : vector<4x64xf32>
    %c53 = arith.constant 53 : index
    %146 = memref.load %arg4[%c53] : memref<65xf32, #tpu.memory_space<smem>>
    %147 = vector.broadcast %146 : f32 to vector<4x64xf32>
    %148 = arith.mulf %147, %145 : vector<4x64xf32>
    %149 = arith.addf %132, %148 : vector<4x64xf32>
    %c6 = arith.constant 6 : index
    %150 = memref.load %arg4[%c6] : memref<65xf32, #tpu.memory_space<smem>>
    %151 = vector.broadcast %150 : f32 to vector<4x64xf32>
    %152 = arith.mulf %33, %151 : vector<4x64xf32>
    %c22 = arith.constant 22 : index
    %153 = memref.load %arg4[%c22] : memref<65xf32, #tpu.memory_space<smem>>
    %154 = vector.broadcast %153 : f32 to vector<4x64xf32>
    %155 = arith.mulf %46, %154 : vector<4x64xf32>
    %156 = arith.addf %152, %155 : vector<4x64xf32>
    %c38 = arith.constant 38 : index
    %157 = memref.load %arg4[%c38] : memref<65xf32, #tpu.memory_space<smem>>
    %158 = vector.broadcast %157 : f32 to vector<4x64xf32>
    %159 = arith.addf %156, %158 : vector<4x64xf32>
    %cst_31 = arith.constant 0.00999999977 : f32
    %160 = vector.broadcast %cst_31 : f32 to vector<4x64xf32>
    %161 = arith.mulf %160, %159 : vector<4x64xf32>
    %162 = arith.maximumf %159, %161 : vector<4x64xf32>
    %c54 = arith.constant 54 : index
    %163 = memref.load %arg4[%c54] : memref<65xf32, #tpu.memory_space<smem>>
    %164 = vector.broadcast %163 : f32 to vector<4x64xf32>
    %165 = arith.mulf %164, %162 : vector<4x64xf32>
    %166 = arith.addf %149, %165 : vector<4x64xf32>
    %c7 = arith.constant 7 : index
    %167 = memref.load %arg4[%c7] : memref<65xf32, #tpu.memory_space<smem>>
    %168 = vector.broadcast %167 : f32 to vector<4x64xf32>
    %169 = arith.mulf %33, %168 : vector<4x64xf32>
    %c23 = arith.constant 23 : index
    %170 = memref.load %arg4[%c23] : memref<65xf32, #tpu.memory_space<smem>>
    %171 = vector.broadcast %170 : f32 to vector<4x64xf32>
    %172 = arith.mulf %46, %171 : vector<4x64xf32>
    %173 = arith.addf %169, %172 : vector<4x64xf32>
    %c39 = arith.constant 39 : index
    %174 = memref.load %arg4[%c39] : memref<65xf32, #tpu.memory_space<smem>>
    %175 = vector.broadcast %174 : f32 to vector<4x64xf32>
    %176 = arith.addf %173, %175 : vector<4x64xf32>
    %cst_32 = arith.constant 0.00999999977 : f32
    %177 = vector.broadcast %cst_32 : f32 to vector<4x64xf32>
    %178 = arith.mulf %177, %176 : vector<4x64xf32>
    %179 = arith.maximumf %176, %178 : vector<4x64xf32>
    %c55 = arith.constant 55 : index
    %180 = memref.load %arg4[%c55] : memref<65xf32, #tpu.memory_space<smem>>
    %181 = vector.broadcast %180 : f32 to vector<4x64xf32>
    %182 = arith.mulf %181, %179 : vector<4x64xf32>
    %183 = arith.addf %166, %182 : vector<4x64xf32>
    %c8 = arith.constant 8 : index
    %184 = memref.load %arg4[%c8] : memref<65xf32, #tpu.memory_space<smem>>
    %185 = vector.broadcast %184 : f32 to vector<4x64xf32>
    %186 = arith.mulf %33, %185 : vector<4x64xf32>
    %c24 = arith.constant 24 : index
    %187 = memref.load %arg4[%c24] : memref<65xf32, #tpu.memory_space<smem>>
    %188 = vector.broadcast %187 : f32 to vector<4x64xf32>
    %189 = arith.mulf %46, %188 : vector<4x64xf32>
    %190 = arith.addf %186, %189 : vector<4x64xf32>
    %c40 = arith.constant 40 : index
    %191 = memref.load %arg4[%c40] : memref<65xf32, #tpu.memory_space<smem>>
    %192 = vector.broadcast %191 : f32 to vector<4x64xf32>
    %193 = arith.addf %190, %192 : vector<4x64xf32>
    %cst_33 = arith.constant 0.00999999977 : f32
    %194 = vector.broadcast %cst_33 : f32 to vector<4x64xf32>
    %195 = arith.mulf %194, %193 : vector<4x64xf32>
    %196 = arith.maximumf %193, %195 : vector<4x64xf32>
    %c56 = arith.constant 56 : index
    %197 = memref.load %arg4[%c56] : memref<65xf32, #tpu.memory_space<smem>>
    %198 = vector.broadcast %197 : f32 to vector<4x64xf32>
    %199 = arith.mulf %198, %196 : vector<4x64xf32>
    %200 = arith.addf %183, %199 : vector<4x64xf32>
    %c9 = arith.constant 9 : index
    %201 = memref.load %arg4[%c9] : memref<65xf32, #tpu.memory_space<smem>>
    %202 = vector.broadcast %201 : f32 to vector<4x64xf32>
    %203 = arith.mulf %33, %202 : vector<4x64xf32>
    %c25 = arith.constant 25 : index
    %204 = memref.load %arg4[%c25] : memref<65xf32, #tpu.memory_space<smem>>
    %205 = vector.broadcast %204 : f32 to vector<4x64xf32>
    %206 = arith.mulf %46, %205 : vector<4x64xf32>
    %207 = arith.addf %203, %206 : vector<4x64xf32>
    %c41 = arith.constant 41 : index
    %208 = memref.load %arg4[%c41] : memref<65xf32, #tpu.memory_space<smem>>
    %209 = vector.broadcast %208 : f32 to vector<4x64xf32>
    %210 = arith.addf %207, %209 : vector<4x64xf32>
    %cst_34 = arith.constant 0.00999999977 : f32
    %211 = vector.broadcast %cst_34 : f32 to vector<4x64xf32>
    %212 = arith.mulf %211, %210 : vector<4x64xf32>
    %213 = arith.maximumf %210, %212 : vector<4x64xf32>
    %c57 = arith.constant 57 : index
    %214 = memref.load %arg4[%c57] : memref<65xf32, #tpu.memory_space<smem>>
    %215 = vector.broadcast %214 : f32 to vector<4x64xf32>
    %216 = arith.mulf %215, %213 : vector<4x64xf32>
    %217 = arith.addf %200, %216 : vector<4x64xf32>
    %c10 = arith.constant 10 : index
    %218 = memref.load %arg4[%c10] : memref<65xf32, #tpu.memory_space<smem>>
    %219 = vector.broadcast %218 : f32 to vector<4x64xf32>
    %220 = arith.mulf %33, %219 : vector<4x64xf32>
    %c26 = arith.constant 26 : index
    %221 = memref.load %arg4[%c26] : memref<65xf32, #tpu.memory_space<smem>>
    %222 = vector.broadcast %221 : f32 to vector<4x64xf32>
    %223 = arith.mulf %46, %222 : vector<4x64xf32>
    %224 = arith.addf %220, %223 : vector<4x64xf32>
    %c42 = arith.constant 42 : index
    %225 = memref.load %arg4[%c42] : memref<65xf32, #tpu.memory_space<smem>>
    %226 = vector.broadcast %225 : f32 to vector<4x64xf32>
    %227 = arith.addf %224, %226 : vector<4x64xf32>
    %cst_35 = arith.constant 0.00999999977 : f32
    %228 = vector.broadcast %cst_35 : f32 to vector<4x64xf32>
    %229 = arith.mulf %228, %227 : vector<4x64xf32>
    %230 = arith.maximumf %227, %229 : vector<4x64xf32>
    %c58 = arith.constant 58 : index
    %231 = memref.load %arg4[%c58] : memref<65xf32, #tpu.memory_space<smem>>
    %232 = vector.broadcast %231 : f32 to vector<4x64xf32>
    %233 = arith.mulf %232, %230 : vector<4x64xf32>
    %234 = arith.addf %217, %233 : vector<4x64xf32>
    %c11 = arith.constant 11 : index
    %235 = memref.load %arg4[%c11] : memref<65xf32, #tpu.memory_space<smem>>
    %236 = vector.broadcast %235 : f32 to vector<4x64xf32>
    %237 = arith.mulf %33, %236 : vector<4x64xf32>
    %c27 = arith.constant 27 : index
    %238 = memref.load %arg4[%c27] : memref<65xf32, #tpu.memory_space<smem>>
    %239 = vector.broadcast %238 : f32 to vector<4x64xf32>
    %240 = arith.mulf %46, %239 : vector<4x64xf32>
    %241 = arith.addf %237, %240 : vector<4x64xf32>
    %c43 = arith.constant 43 : index
    %242 = memref.load %arg4[%c43] : memref<65xf32, #tpu.memory_space<smem>>
    %243 = vector.broadcast %242 : f32 to vector<4x64xf32>
    %244 = arith.addf %241, %243 : vector<4x64xf32>
    %cst_36 = arith.constant 0.00999999977 : f32
    %245 = vector.broadcast %cst_36 : f32 to vector<4x64xf32>
    %246 = arith.mulf %245, %244 : vector<4x64xf32>
    %247 = arith.maximumf %244, %246 : vector<4x64xf32>
    %c59 = arith.constant 59 : index
    %248 = memref.load %arg4[%c59] : memref<65xf32, #tpu.memory_space<smem>>
    %249 = vector.broadcast %248 : f32 to vector<4x64xf32>
    %250 = arith.mulf %249, %247 : vector<4x64xf32>
    %251 = arith.addf %234, %250 : vector<4x64xf32>
    %c12 = arith.constant 12 : index
    %252 = memref.load %arg4[%c12] : memref<65xf32, #tpu.memory_space<smem>>
    %253 = vector.broadcast %252 : f32 to vector<4x64xf32>
    %254 = arith.mulf %33, %253 : vector<4x64xf32>
    %c28 = arith.constant 28 : index
    %255 = memref.load %arg4[%c28] : memref<65xf32, #tpu.memory_space<smem>>
    %256 = vector.broadcast %255 : f32 to vector<4x64xf32>
    %257 = arith.mulf %46, %256 : vector<4x64xf32>
    %258 = arith.addf %254, %257 : vector<4x64xf32>
    %c44 = arith.constant 44 : index
    %259 = memref.load %arg4[%c44] : memref<65xf32, #tpu.memory_space<smem>>
    %260 = vector.broadcast %259 : f32 to vector<4x64xf32>
    %261 = arith.addf %258, %260 : vector<4x64xf32>
    %cst_37 = arith.constant 0.00999999977 : f32
    %262 = vector.broadcast %cst_37 : f32 to vector<4x64xf32>
    %263 = arith.mulf %262, %261 : vector<4x64xf32>
    %264 = arith.maximumf %261, %263 : vector<4x64xf32>
    %c60 = arith.constant 60 : index
    %265 = memref.load %arg4[%c60] : memref<65xf32, #tpu.memory_space<smem>>
    %266 = vector.broadcast %265 : f32 to vector<4x64xf32>
    %267 = arith.mulf %266, %264 : vector<4x64xf32>
    %268 = arith.addf %251, %267 : vector<4x64xf32>
    %c13 = arith.constant 13 : index
    %269 = memref.load %arg4[%c13] : memref<65xf32, #tpu.memory_space<smem>>
    %270 = vector.broadcast %269 : f32 to vector<4x64xf32>
    %271 = arith.mulf %33, %270 : vector<4x64xf32>
    %c29 = arith.constant 29 : index
    %272 = memref.load %arg4[%c29] : memref<65xf32, #tpu.memory_space<smem>>
    %273 = vector.broadcast %272 : f32 to vector<4x64xf32>
    %274 = arith.mulf %46, %273 : vector<4x64xf32>
    %275 = arith.addf %271, %274 : vector<4x64xf32>
    %c45 = arith.constant 45 : index
    %276 = memref.load %arg4[%c45] : memref<65xf32, #tpu.memory_space<smem>>
    %277 = vector.broadcast %276 : f32 to vector<4x64xf32>
    %278 = arith.addf %275, %277 : vector<4x64xf32>
    %cst_38 = arith.constant 0.00999999977 : f32
    %279 = vector.broadcast %cst_38 : f32 to vector<4x64xf32>
    %280 = arith.mulf %279, %278 : vector<4x64xf32>
    %281 = arith.maximumf %278, %280 : vector<4x64xf32>
    %c61 = arith.constant 61 : index
    %282 = memref.load %arg4[%c61] : memref<65xf32, #tpu.memory_space<smem>>
    %283 = vector.broadcast %282 : f32 to vector<4x64xf32>
    %284 = arith.mulf %283, %281 : vector<4x64xf32>
    %285 = arith.addf %268, %284 : vector<4x64xf32>
    %c14 = arith.constant 14 : index
    %286 = memref.load %arg4[%c14] : memref<65xf32, #tpu.memory_space<smem>>
    %287 = vector.broadcast %286 : f32 to vector<4x64xf32>
    %288 = arith.mulf %33, %287 : vector<4x64xf32>
    %c30 = arith.constant 30 : index
    %289 = memref.load %arg4[%c30] : memref<65xf32, #tpu.memory_space<smem>>
    %290 = vector.broadcast %289 : f32 to vector<4x64xf32>
    %291 = arith.mulf %46, %290 : vector<4x64xf32>
    %292 = arith.addf %288, %291 : vector<4x64xf32>
    %c46 = arith.constant 46 : index
    %293 = memref.load %arg4[%c46] : memref<65xf32, #tpu.memory_space<smem>>
    %294 = vector.broadcast %293 : f32 to vector<4x64xf32>
    %295 = arith.addf %292, %294 : vector<4x64xf32>
    %cst_39 = arith.constant 0.00999999977 : f32
    %296 = vector.broadcast %cst_39 : f32 to vector<4x64xf32>
    %297 = arith.mulf %296, %295 : vector<4x64xf32>
    %298 = arith.maximumf %295, %297 : vector<4x64xf32>
    %c62 = arith.constant 62 : index
    %299 = memref.load %arg4[%c62] : memref<65xf32, #tpu.memory_space<smem>>
    %300 = vector.broadcast %299 : f32 to vector<4x64xf32>
    %301 = arith.mulf %300, %298 : vector<4x64xf32>
    %302 = arith.addf %285, %301 : vector<4x64xf32>
    %c15 = arith.constant 15 : index
    %303 = memref.load %arg4[%c15] : memref<65xf32, #tpu.memory_space<smem>>
    %304 = vector.broadcast %303 : f32 to vector<4x64xf32>
    %305 = arith.mulf %33, %304 : vector<4x64xf32>
    %c31 = arith.constant 31 : index
    %306 = memref.load %arg4[%c31] : memref<65xf32, #tpu.memory_space<smem>>
    %307 = vector.broadcast %306 : f32 to vector<4x64xf32>
    %308 = arith.mulf %46, %307 : vector<4x64xf32>
    %309 = arith.addf %305, %308 : vector<4x64xf32>
    %c47 = arith.constant 47 : index
    %310 = memref.load %arg4[%c47] : memref<65xf32, #tpu.memory_space<smem>>
    %311 = vector.broadcast %310 : f32 to vector<4x64xf32>
    %312 = arith.addf %309, %311 : vector<4x64xf32>
    %cst_40 = arith.constant 0.00999999977 : f32
    %313 = vector.broadcast %cst_40 : f32 to vector<4x64xf32>
    %314 = arith.mulf %313, %312 : vector<4x64xf32>
    %315 = arith.maximumf %312, %314 : vector<4x64xf32>
    %c63 = arith.constant 63 : index
    %316 = memref.load %arg4[%c63] : memref<65xf32, #tpu.memory_space<smem>>
    %317 = vector.broadcast %316 : f32 to vector<4x64xf32>
    %318 = arith.mulf %317, %315 : vector<4x64xf32>
    %319 = arith.addf %302, %318 : vector<4x64xf32>
    %c64 = arith.constant 64 : index
    %320 = memref.load %arg4[%c64] : memref<65xf32, #tpu.memory_space<smem>>
    %321 = vector.broadcast %320 : f32 to vector<4x64xf32>
    %322 = arith.addf %319, %321 : vector<4x64xf32>
    %323 = arith.negf %322 : vector<4x64xf32>
    %324 = math.exp %323 : vector<4x64xf32>
    %cst_41 = arith.constant 1.000000e+00 : f32
    %325 = vector.broadcast %cst_41 : f32 to vector<4x64xf32>
    %326 = arith.addf %325, %324 : vector<4x64xf32>
    %327 = arith.divf %325, %326 : vector<4x64xf32>
    %cst_42 = arith.constant 0.699999988 : f32
    %328 = vector.broadcast %cst_42 : f32 to vector<4x64xf32>
    %329 = arith.mulf %328, %327 : vector<4x64xf32>
    %330 = arith.negf %37 : vector<1x64xf32>
    %331 = math.exp %330 : vector<1x64xf32>
    %cst_43 = arith.constant 1.000000e+00 : f32
    %332 = vector.broadcast %cst_43 : f32 to vector<1x64xf32>
    %333 = arith.addf %332, %331 : vector<1x64xf32>
    %334 = arith.divf %332, %333 : vector<1x64xf32>
    %cst_44 = arith.constant 3.000000e-01 : f32
    %335 = vector.broadcast %cst_44 : f32 to vector<1x64xf32>
    %336 = arith.mulf %335, %334 : vector<1x64xf32>
    %337 = vector.broadcast %336 : vector<1x64xf32> to vector<4x64xf32>
    %338 = arith.addf %329, %337 : vector<4x64xf32>
    %c0_45 = arith.constant 0 : index
    %c0_46 = arith.constant 0 : index
    %339 = vector.load %arg2[%c0_45, %c0_46] : memref<4x1xf32, #tpu.memory_space<vmem>>, vector<4x1xf32>
    %340 = vector.broadcast %339 : vector<4x1xf32> to vector<4x64xf32>
    %341 = arith.mulf %338, %340 : vector<4x64xf32>
    %342 = vector.extract_strided_slice %341 {offsets = [0, 0], sizes = [1, 64], strides = [1, 1]} : vector<4x64xf32> to vector<1x64xf32>
    %cst_47 = arith.constant dense<0.000000e+00> : vector<64xf32>
    %343 = vector.multi_reduction <add>, %341, %cst_47 [0] : vector<4x64xf32> to vector<64xf32>
    %344 = vector.shape_cast %343 : vector<64xf32> to vector<1x64xf32>
    %345 = arith.subf %344, %342 : vector<1x64xf32>
    %cst_48 = arith.constant 0.333333343 : f32
    %346 = vector.broadcast %cst_48 : f32 to vector<1x64xf32>
    %347 = arith.mulf %345, %346 : vector<1x64xf32>
    %348 = arith.mulf %342, %38 : vector<1x64xf32>
    %349 = arith.mulf %347, %38 : vector<1x64xf32>
    %350 = tpu.concatenate %348, %349 in 1 : vector<1x64xf32>, vector<1x64xf32> -> vector<1x128xf32>
    %c0_49 = arith.constant 0 : index
    %c0_50 = arith.constant 0 : index
    %351 = vector.load %arg5[%c0_49, %c0_50] : memref<1x128xf32, #tpu.memory_space<vmem>>, vector<1x128xf32>
    tpu.vector_store %arg5[%c0_49, %c0_50], %350 {strides = array<i32>} : memref<1x128xf32, #tpu.memory_space<vmem>>, vector<1x128xf32>,
    return
  }
}

</mosaic_0001>

<llo_original>
// kernel: squeeze.6
$region0: #{squeeze.6}
  %s0 = inlined_call_operand.vmem [shape: f32[64], index: 0, kind: input, shape index: {}]
  %s1 = inlined_call_operand.hbm [shape: f32[8,8], index: 1, kind: output, shape index: {}]
  $region1: #{squeeze.6} parent=0
    #allocation0 [shape = 'u8[4096]{0}', space=vmem, size = 0x1000, scoped, tag = 'operand span for operand 1']
    #allocation1 [shape = 's32[1]{0}', space=sflag, size = 0x4, scoped, tag = 'scoped memory for squeeze.6']
    #allocation2 [shape = 'u8[4096]{0}', space=vmem, size = 0x1000, scoped, tag = 'scoped mem for input reshape']
    %2 = vsyncpa [#allocation1], 0
    %s4 = ssub.s32 2, 1
    %v5 = vld [vmem:[%s0] sm:%s4]
    %6 = vst [vmem:[#allocation2] sm:%s4] %v5
    %v7 = vld [vmem:[#allocation2] sm:$0x1]
    %vm8 = vcmask 64512
    %9 = vst.msk [vmem:[#allocation0] sm:$0x1] %vm8, %v7
    %v10 = vld [vmem:[#allocation2] sm:$0x1]
    %11 = vrot.lane.b32.xlu0 %v10, 120
    %v12 = vpop.permute.xlu0 %11
    %vm13 = vcmask 64512
    %s14 = scalar_lea.vmem [#allocation0], 1
    %15 = vst.msk [vmem:[%s14] sm:$0x1] %vm13, %v12
    %v16 = vld [vmem:[#allocation2] sm:$0x1]
    %17 = vrot.lane.b32.xlu0 %v16, 112
    %v18 = vpop.permute.xlu0 %17
    %vm19 = vcmask 64512
    %s20 = scalar_lea.vmem [#allocation0], 2
    %21 = vst.msk [vmem:[%s20] sm:$0x1] %vm19, %v18
    %v22 = vld [vmem:[#allocation2] sm:$0x1]
    %23 = vrot.lane.b32.xlu0 %v22, 104
    %v24 = vpop.permute.xlu0 %23
    %vm25 = vcmask 64512
    %s26 = scalar_lea.vmem [#allocation0], 3
    %27 = vst.msk [vmem:[%s26] sm:$0x1] %vm25, %v24
    %v28 = vld [vmem:[#allocation2] sm:$0x1]
    %29 = vrot.lane.b32.xlu0 %v28, 96
    %v30 = vpop.permute.xlu0 %29
    %vm31 = vcmask 64512
    %s32 = scalar_lea.vmem [#allocation0], 4
    %33 = vst.msk [vmem:[%s32] sm:$0x1] %vm31, %v30
    %v34 = vld [vmem:[#allocation2] sm:$0x1]
    %35 = vrot.lane.b32.xlu0 %v34, 88
    %v36 = vpop.permute.xlu0 %35
    %vm37 = vcmask 64512
    %s38 = scalar_lea.vmem [#allocation0], 5
    %39 = vst.msk [vmem:[%s38] sm:$0x1] %vm37, %v36
    %v40 = vld [vmem:[#allocation2] sm:$0x1]
    %41 = vrot.lane.b32.xlu0 %v40, 80
    %v42 = vpop.permute.xlu0 %41
    %vm43 = vcmask 64512
    %s44 = scalar_lea.vmem [#allocation0], 6
    %45 = vst.msk [vmem:[%s44] sm:$0x1] %vm43, %v42
    %v46 = vld [vmem:[#allocation2] sm:$0x1]
    %47 = vrot.lane.b32.xlu0 %v46, 72
    %v48 = vpop.permute.xlu0 %47
    %vm49 = vcmask 64512
    %s50 = scalar_lea.vmem [#allocation0], 7
    %51 = vst.msk [vmem:[%s50] sm:$0x1] %vm49, %v48
    %53 = vsyncadd [#allocation1], 0
    %s55 = sshll.u32 [#allocation0], 4
    %s56 = int_to_ptr.vmem [resolvable:$true] %s55
    %s57 = sshll.u32 %s1, 4
    %s58 = int_to_ptr.hbm [resolvable:$true] %s57
    %60 = dma.vmem_to_hbm [thread:$0]  %s56, 128, %s58, [#allocation1]
    %62 = dma.done [#allocation1], 128
    %63 = vsyncpa [#allocation1], 1

// kernel: temporal_causal_graph_forward.1
$region0: #{temporal_causal_graph_forward.1}
  #allocation0 [shape = 'u32[]', space=smem, size = 0x4, offset = 0x4, fixed_abs, tag = 'smem constant byte address 0x4 - core index']
  #allocation1 [shape = 'u32[72,128]{1,0:T(1,128)}', space=vmem, size = 0x9000, scoped, tag = 'internal scratch']
  %s0 = inlined_call_operand.vmem [shape: f32[4,2,16,8], index: 0, kind: input, shape index: {}]
  %s1 = inlined_call_operand.vmem [shape: f32[4,64], index: 1, kind: input, shape index: {}]
  %s2 = inlined_call_operand.vmem [shape: f32[4,1], index: 2, kind: input, shape index: {}]
  %s3 = inlined_call_operand.vmem [shape: f32[2,8,64], index: 3, kind: input, shape index: {}]
  %s4 = inlined_call_operand.vmem [shape: f32[65], index: 4, kind: input, shape index: {}]
  %s5 = inlined_call_operand.vmem [shape: f32[1,128], index: 5, kind: output, shape index: {}]
  %s6 = sld [smem:[#allocation0]]
  $region34: #{temporal_causal_graph_forward.1} parent=0
    _
  %s8 = ssub.s32 1, %s6
  %s9 = scalar_select 0, %s8, %s6
  $region1: #{temporal_causal_graph_forward.1} parent=0
    #allocation2 [shape = 'u8[512]{0}', space=smem, size = 0x200, scoped, tag = 'input window, operand 4, single buffered']
    #allocation3 [shape = 's32[1]{0}', space=sflag, size = 0x4, scoped, tag = 'scoped memory for temporal_causal_graph_forward.1']
    %10 = vsyncpa [#allocation3], 0
    // Predicated region
    $region2: #{temporal_causal_graph_forward.1} parent=1 // pred_check
      _
    $region3: #{temporal_causal_graph_forward.1} parent=1 // pred_check_branch
      %12 = sbr.rel (0) target = $region5
    $region4: #{temporal_causal_graph_forward.1} parent=1 // pred_region
      _
    $region5: #{temporal_causal_graph_forward.1} parent=1 // pred_fallthru
      _
    // Predicated region
    $region6: #{temporal_causal_graph_forward.1} parent=1 // pred_check
      _
    $region7: #{temporal_causal_graph_forward.1} parent=1 // pred_check_branch
      %14 = sbr.rel (0) target = $region9
    $region8: #{temporal_causal_graph_forward.1} parent=1 // pred_region
      _
    $region9: #{temporal_causal_graph_forward.1} parent=1 // pred_fallthru
      _
    // Predicated region
    $region10: #{temporal_causal_graph_forward.1} parent=1 // pred_check
      _
    $region11: #{temporal_causal_graph_forward.1} parent=1 // pred_check_branch
      %16 = sbr.rel (0) target = $region13
    $region12: #{temporal_causal_graph_forward.1} parent=1 // pred_region
      _
    $region13: #{temporal_causal_graph_forward.1} parent=1 // pred_fallthru
      _
    // Predicated region
    $region14: #{temporal_causal_graph_forward.1} parent=1 // pred_check
      _
    $region15: #{temporal_causal_graph_forward.1} parent=1 // pred_check_branch
      %18 = sbr.rel (0) target = $region17
    $region16: #{temporal_causal_graph_forward.1} parent=1 // pred_region
      _
    $region17: #{temporal_causal_graph_forward.1} parent=1 // pred_fallthru
      _
    // Predicated region
    $region18: #{temporal_causal_graph_forward.1} parent=1 // pred_check
      _
    $region19: #{temporal_causal_graph_forward.1} parent=1 // pred_check_branch
      %20 = sbr.rel (0) target = $region21
    $region20: #{temporal_causal_graph_forward.1} parent=1 // pred_region
      %22 = vsyncadd [#allocation3], 0
      %s24 = sshll.u32 %s4, 4
      %s25 = int_to_ptr.vmem [resolvable:$true] %s24
      %27 = dma.vmem_to_smem %s25, 16, [#allocation2], [#allocation3]
    $region21: #{temporal_causal_graph_forward.1} parent=1 // pred_fallthru
      _
    // Predicated region
    $region22: #{temporal_causal_graph_forward.1} parent=1 // pred_check
      _
    $region23: #{temporal_causal_graph_forward.1} parent=1 // pred_check_branch
      %29 = sbr.rel (0) target = $region25
    $region24: #{temporal_causal_graph_forward.1} parent=1 // pred_region
      %31 = dma.done [#allocation3], 16
    $region25: #{temporal_causal_graph_forward.1} parent=1 // pred_fallthru
      _
    %32 = sfence
    %v33 = vld [vmem:[%s0] sm:$0xff]
    %v34 = vld [vmem:[%s0 + $0x8] sm:$0xff]
    %v35 = vld [vmem:[%s0 + $0x10] sm:$0xff]
    %v36 = vld [vmem:[%s0 + $0x18] sm:$0xff]
    %v37 = vld [vmem:[%s0 + $0x20] sm:$0xff]
    %v38 = vld [vmem:[%s0 + $0x28] sm:$0xff]
    %v39 = vld [vmem:[%s0 + $0x30] sm:$0xff]
    %v40 = vld [vmem:[%s0 + $0x38] sm:$0xff]
    %v41 = vld [vmem:[%s0 + $0x40] sm:$0xff]
    %v42 = vld [vmem:[%s0 + $0x48] sm:$0xff]
    %v43 = vld [vmem:[%s0 + $0x50] sm:$0xff]
    %v44 = vld [vmem:[%s0 + $0x58] sm:$0xff]
    %v45 = vld [vmem:[%s0 + $0x60] sm:$0xff]
    %v46 = vld [vmem:[%s0 + $0x68] sm:$0xff]
    %v47 = vld [vmem:[%s0 + $0x70] sm:$0xff]
    %v48 = vld [vmem:[%s0 + $0x78] sm:$0xff]
    %vm49 = vcmask 64512
    %v50 = vsel %vm49, %v33, 0.0
    %v51 = vsel %vm49, %v35, 0.0
    %v52 = vadd.f32 %v50, %v51
    %v53 = vsel %vm49, %v34, 0.0
    %v54 = vsel %vm49, %v36, 0.0
    %v55 = vadd.f32 %v53, %v54
    %v56 = vsel %vm49, %v37, 0.0
    %v57 = vsel %vm49, %v39, 0.0
    %v58 = vadd.f32 %v56, %v57
    %v59 = vsel %vm49, %v38, 0.0
    %v60 = vsel %vm49, %v40, 0.0
    %v61 = vadd.f32 %v59, %v60
    %v62 = vsel %vm49, %v41, 0.0
    %v63 = vsel %vm49, %v43, 0.0
    %v64 = vadd.f32 %v62, %v63
    %v65 = vsel %vm49, %v42, 0.0
    %v66 = vsel %vm49, %v44, 0.0
    %v67 = vadd.f32 %v65, %v66
    %v68 = vsel %vm49, %v45, 0.0
    %v69 = vsel %vm49, %v47, 0.0
    %v70 = vadd.f32 %v68, %v69
    %v71 = vsel %vm49, %v46, 0.0
    %v72 = vsel %vm49, %v48, 0.0
    %v73 = vadd.f32 %v71, %v72
    %v74 = vrcp.pop 2.0
    %v75 = vmul.f32 2.0, %v74
    %v76 = vsub.f32 1.0, %v75
    %v77 = vmul.f32 %v74, %v76
    %v78 = vadd.f32 %v74, %v77
    %vm79 = vweird.f32 %v74
    %v80 = vsel %vm79, %v74, %v78
    %v81 = vmul.f32 %v52, %v80
    %v82 = vmul.f32 %v55, %v80
    %v83 = vmul.f32 %v58, %v80
    %v84 = vmul.f32 %v61, %v80
    %v85 = vmul.f32 %v64, %v80
    %v86 = vmul.f32 %v67, %v80
    %v87 = vmul.f32 %v70, %v80
    %v88 = vmul.f32 %v73, %v80
    %v89 = vsel %vm49, %v81, 0.0
    %v90 = vsel %vm49, %v82, 0.0
    %v91 = vadd.f32 %v89, %v90
    %v92 = vrot.slane %v91, 4
    %v93 = vadd.f32 %v91, %v92
    %v94 = vrot.slane %v93, 2
    %v95 = vadd.f32 %v93, %v94
    %v96 = vrot.slane %v95, 1
    %v97 = vadd.f32 %v95, %v96
    %v98 = vsel %vm49, %v83, 0.0
    %v99 = vsel %vm49, %v84, 0.0
    %v100 = vadd.f32 %v98, %v99
    %v101 = vrot.slane %v100, 4
    %v102 = vadd.f32 %v100, %v101
    %v103 = vrot.slane %v102, 2
    %v104 = vadd.f32 %v102, %v103
    %v105 = vrot.slane %v104, 1
    %v106 = vadd.f32 %v104, %v105
    %v107 = vsel %vm49, %v85, 0.0
    %v108 = vsel %vm49, %v86, 0.0
    %v109 = vadd.f32 %v107, %v108
    %v110 = vrot.slane %v109, 4
    %v111 = vadd.f32 %v109, %v110
    %v112 = vrot.slane %v111, 2
    %v113 = vadd.f32 %v111, %v112
    %v114 = vrot.slane %v113, 1
    %v115 = vadd.f32 %v113, %v114
    %v116 = vsel %vm49, %v87, 0.0
    %v117 = vsel %vm49, %v88, 0.0
    %v118 = vadd.f32 %v116, %v117
    %v119 = vrot.slane %v118, 4
    %v120 = vadd.f32 %v118, %v119
    %v121 = vrot.slane %v120, 2
    %v122 = vadd.f32 %v120, %v121
    %v123 = vrot.slane %v122, 1
    %v124 = vadd.f32 %v122, %v123
    %v125 = vrcp.pop 16.0
    %v126 = vmul.f32 16.0, %v125
    %v127 = vsub.f32 1.0, %v126
    %v128 = vmul.f32 %v125, %v127
    %v129 = vadd.f32 %v125, %v128
    %vm130 = vweird.f32 %v125
    %v131 = vsel %vm130, %v125, %v129
    %v132 = vmul.f32 %v97, %v131
    %v133 = vmul.f32 %v106, %v131
    %v134 = vmul.f32 %v115, %v131
    %v135 = vmul.f32 %v124, %v131
    %v136 = vsub.f32 %v81, %v132
    %v137 = vsub.f32 %v82, %v132
    %v138 = vsub.f32 %v83, %v133
    %v139 = vsub.f32 %v84, %v133
    %v140 = vsub.f32 %v85, %v134
    %v141 = vsub.f32 %v86, %v134
    %v142 = vsub.f32 %v87, %v135
    %v143 = vsub.f32 %v88, %v135
    %v144 = vld [vmem:[%s3] sm:$0xff]
    %s145 = scalar_lea.vmem %s3, 8
    %v146 = vld [vmem:[%s145] sm:$0xff]
    %v148 = vsel %vm49, %v136, 0
    %v151 = vsel %vm49, %v137, 0
    %v154 = vsel %vm49, %v138, 0
    %v157 = vsel %vm49, %v139, 0
    %v160 = vsel %vm49, %v140, 0
    %v163 = vsel %vm49, %v141, 0
    %v166 = vsel %vm49, %v142, 0
    %v169 = vsel %vm49, %v143, 0
    %171 = vmatpush.msra.mxu0 0.0
    %172 = vmatpush.msra.mxu0 0.0
    %173 = vmatpush.msra.mxu0 0.0
    %174 = vmatpush.msra.mxu0 0.0
    %175 = vmatpush.msra.mxu0 0.0
    %176 = vmatpush.msra.mxu0 0.0
    %177 = vmatpush.msra.mxu0 0.0
    %178 = vmatpush.msra.mxu0 0.0
    %179 = vmatpush.msra.mxu0 0.0
    %180 = vmatpush.msra.mxu0 0.0
    %181 = vmatpush.msra.mxu0 0.0
    %182 = vmatpush.msra.mxu0 0.0
    %183 = vmatpush.msra.mxu0 0.0
    %184 = vmatpush.msra.mxu0 0.0
    %185 = vmatpush.msra.mxu0 0.0
    %186 = vmatpush.msra.mxu0 %v144
    %187 = vmatmul.f32.gmra.mxu0 %v148
    %v188 = vpop.f32.mrf.mxu0
    %v189 = vadd.f32 0.0, %v188
    %190 = vmatmul.f32.gmra.mxu0 %v151
    %v191 = vpop.f32.mrf.mxu0
    %v192 = vadd.f32 0.0, %v191
    %193 = vmatmul.f32.gmra.mxu0 %v154
    %v194 = vpop.f32.mrf.mxu0
    %v195 = vadd.f32 0.0, %v194
    %196 = vmatmul.f32.gmra.mxu0 %v157
    %v197 = vpop.f32.mrf.mxu0
    %v198 = vadd.f32 0.0, %v197
    %199 = vmatmul.f32.gmra.mxu0 %v160
    %v200 = vpop.f32.mrf.mxu0
    %v201 = vadd.f32 0.0, %v200
    %202 = vmatmul.f32.gmra.mxu0 %v163
    %v203 = vpop.f32.mrf.mxu0
    %v204 = vadd.f32 0.0, %v203
    %205 = vmatmul.f32.gmra.mxu0 %v166
    %v206 = vpop.f32.mrf.mxu0
    %v207 = vadd.f32 0.0, %v206
    %208 = vmatmul.f32.gmra.mxu0 %v169
    %v209 = vpop.f32.mrf.mxu0
    %v210 = vadd.f32 0.0, %v209
    %211 = vdwg.mxu0
    %212 = vmatpush.msra.mxu0 0.0
    %213 = vmatpush.msra.mxu0 0.0
    %214 = vmatpush.msra.mxu0 0.0
    %215 = vmatpush.msra.mxu0 0.0
    %216 = vmatpush.msra.mxu0 0.0
    %217 = vmatpush.msra.mxu0 0.0
    %218 = vmatpush.msra.mxu0 0.0
    %219 = vmatpush.msra.mxu0 0.0
    %220 = vmatpush.msra.mxu0 0.0
    %221 = vmatpush.msra.mxu0 0.0
    %222 = vmatpush.msra.mxu0 0.0
    %223 = vmatpush.msra.mxu0 0.0
    %224 = vmatpush.msra.mxu0 0.0
    %225 = vmatpush.msra.mxu0 0.0
    %226 = vmatpush.msra.mxu0 0.0
    %227 = vmatpush.msra.mxu0 %v146
    %228 = vmatmul.f32.gmra.mxu0 %v148
    %v229 = vpop.f32.mrf.mxu0
    %v230 = vadd.f32 0.0, %v229
    %231 = vmatmul.f32.gmra.mxu0 %v151
    %v232 = vpop.f32.mrf.mxu0
    %v233 = vadd.f32 0.0, %v232
    %234 = vmatmul.f32.gmra.mxu0 %v154
    %v235 = vpop.f32.mrf.mxu0
    %v236 = vadd.f32 0.0, %v235
    %237 = vmatmul.f32.gmra.mxu0 %v157
    %v238 = vpop.f32.mrf.mxu0
    %v239 = vadd.f32 0.0, %v238
    %240 = vmatmul.f32.gmra.mxu0 %v160
    %v241 = vpop.f32.mrf.mxu0
    %v242 = vadd.f32 0.0, %v241
    %243 = vmatmul.f32.gmra.mxu0 %v163
    %v244 = vpop.f32.mrf.mxu0
    %v245 = vadd.f32 0.0, %v244
    %246 = vmatmul.f32.gmra.mxu0 %v166
    %v247 = vpop.f32.mrf.mxu0
    %v248 = vadd.f32 0.0, %v247
    %249 = vmatmul.f32.gmra.mxu0 %v169
    %v250 = vpop.f32.mrf.mxu0
    %v251 = vadd.f32 0.0, %v250
    %252 = vdwg.mxu0
    %v253 = vmul.f32 %v189, %v230
    %v254 = vmul.f32 %v192, %v233
    %v255 = vmul.f32 %v195, %v236
    %v256 = vmul.f32 %v198, %v239
    %v257 = vmul.f32 %v201, %v242
    %v258 = vmul.f32 %v204, %v245
    %v259 = vmul.f32 %v207, %v248
    %v260 = vmul.f32 %v210, %v251
    %vm261 = vcmask 523264
    %v262 = vsel %vm261, %v253, 0.0
    %v263 = vsel %vm261, %v254, 0.0
    %v264 = vadd.f32 %v262, %v263
    %v265 = vrot.slane %v264, 4
    %v266 = vadd.f32 %v264, %v265
    %v267 = vrot.slane %v266, 2
    %v268 = vadd.f32 %v266, %v267
    %v269 = vrot.slane %v268, 1
    %v270 = vadd.f32 %v268, %v269
    %v271 = vsel %vm261, %v255, 0.0
    %v272 = vsel %vm261, %v256, 0.0
    %v273 = vadd.f32 %v271, %v272
    %v274 = vrot.slane %v273, 4
    %v275 = vadd.f32 %v273, %v274
    %v276 = vrot.slane %v275, 2
    %v277 = vadd.f32 %v275, %v276
    %v278 = vrot.slane %v277, 1
    %v279 = vadd.f32 %v277, %v278
    %v280 = vsel %vm261, %v257, 0.0
    %v281 = vsel %vm261, %v258, 0.0
    %v282 = vadd.f32 %v280, %v281
    %v283 = vrot.slane %v282, 4
    %v284 = vadd.f32 %v282, %v283
    %v285 = vrot.slane %v284, 2
    %v286 = vadd.f32 %v284, %v285
    %v287 = vrot.slane %v286, 1
    %v288 = vadd.f32 %v286, %v287
    %v289 = vsel %vm261, %v259, 0.0
    %v290 = vsel %vm261, %v260, 0.0
    %v291 = vadd.f32 %v289, %v290
    %v292 = vrot.slane %v291, 4
    %v293 = vadd.f32 %v291, %v292
    %v294 = vrot.slane %v293, 2
    %v295 = vadd.f32 %v293, %v294
    %v296 = vrot.slane %v295, 1
    %v297 = vadd.f32 %v295, %v296
    %v298 = vmul.f32 %v136, %v136
    %v299 = vmul.f32 %v137, %v137
    %v300 = vmul.f32 %v138, %v138
    %v301 = vmul.f32 %v139, %v139
    %v302 = vmul.f32 %v140, %v140
    %v303 = vmul.f32 %v141, %v141
    %v304 = vmul.f32 %v142, %v142
    %v305 = vmul.f32 %v143, %v143
    %v306 = vsel %vm49, %v298, 0.0
    %v307 = vsel %vm49, %v299, 0.0
    %v308 = vadd.f32 %v306, %v307
    %v309 = vrot.slane %v308, 4
    %v310 = vadd.f32 %v308, %v309
    %v311 = vrot.slane %v310, 2
    %v312 = vadd.f32 %v310, %v311
    %v313 = vrot.slane %v312, 1
    %v314 = vadd.f32 %v312, %v313
    %v315 = vsel %vm49, %v300, 0.0
    %v316 = vsel %vm49, %v301, 0.0
    %v317 = vadd.f32 %v315, %v316
    %v318 = vrot.slane %v317, 4
    %v319 = vadd.f32 %v317, %v318
    %v320 = vrot.slane %v319, 2
    %v321 = vadd.f32 %v319, %v320
    %v322 = vrot.slane %v321, 1
    %v323 = vadd.f32 %v321, %v322
    %v324 = vsel %vm49, %v302, 0.0
    %v325 = vsel %vm49, %v303, 0.0
    %v326 = vadd.f32 %v324, %v325
    %v327 = vrot.slane %v326, 4
    %v328 = vadd.f32 %v326, %v327
    %v329 = vrot.slane %v328, 2
    %v330 = vadd.f32 %v328, %v329
    %v331 = vrot.slane %v330, 1
    %v332 = vadd.f32 %v330, %v331
    %v333 = vsel %vm49, %v304, 0.0
    %v334 = vsel %vm49, %v305, 0.0
    %v335 = vadd.f32 %v333, %v334
    %v336 = vrot.slane %v335, 4
    %v337 = vadd.f32 %v335, %v336
    %v338 = vrot.slane %v337, 2
    %v339 = vadd.f32 %v337, %v338
    %v340 = vrot.slane %v339, 1
    %v341 = vadd.f32 %v339, %v340
    %vm346 = vcmask 1041409
    %v347 = vsel %vm346, %v323, %v314
    %vm348 = vcmask 1042434
    %v349 = vsel %vm348, %v332, %v347
    %vm350 = vcmask 1043459
    %v351 = vsel %vm350, %v341, %v349
    %v352 = vsel %vm49, %v351, 0
    %354 = vmatpush.msra.mxu0 0.0
    %355 = vmatpush.msra.mxu0 0.0
    %356 = vmatpush.msra.mxu0 0.0
    %357 = vmatpush.msra.mxu0 0.0
    %358 = vmatpush.msra.mxu0 0.0
    %359 = vmatpush.msra.mxu0 0.0
    %360 = vmatpush.msra.mxu0 0.0
    %361 = vmatpush.msra.mxu0 0.0
    %362 = vmatpush.msra.mxu0 0.0
    %363 = vmatpush.msra.mxu0 0.0
    %364 = vmatpush.msra.mxu0 0.0
    %365 = vmatpush.msra.mxu0 0.0
    %366 = vmatpush.msra.mxu0 0.0
    %367 = vmatpush.msra.mxu0 0.0
    %368 = vmatpush.msra.mxu0 0.0
    %369 = vmatpush.msra.mxu0 %v144
    %370 = vmatmul.f32.gmra.mxu0 %v352
    %v371 = vpop.f32.mrf.mxu0
    %v372 = vadd.f32 0.0, %v371
    %373 = vdwg.mxu0
    %374 = vmatpush.msra.mxu0 0.0
    %375 = vmatpush.msra.mxu0 0.0
    %376 = vmatpush.msra.mxu0 0.0
    %377 = vmatpush.msra.mxu0 0.0
    %378 = vmatpush.msra.mxu0 0.0
    %379 = vmatpush.msra.mxu0 0.0
    %380 = vmatpush.msra.mxu0 0.0
    %381 = vmatpush.msra.mxu0 0.0
    %382 = vmatpush.msra.mxu0 0.0
    %383 = vmatpush.msra.mxu0 0.0
    %384 = vmatpush.msra.mxu0 0.0
    %385 = vmatpush.msra.mxu0 0.0
    %386 = vmatpush.msra.mxu0 0.0
    %387 = vmatpush.msra.mxu0 0.0
    %388 = vmatpush.msra.mxu0 0.0
    %389 = vmatpush.msra.mxu0 %v146
    %390 = vmatmul.f32.gmra.mxu0 %v352
    %v391 = vpop.f32.mrf.mxu0
    %v392 = vadd.f32 0.0, %v391
    %393 = vdwg.mxu0
    %v394 = vmul.f32 %v372, %v392
    %v395 = vadd.f32 %v394, 1e-08
    %v396 = vrsqrt.pop %v395
    %v397 = vmul.f32 %v396, %v395
    %v398 = vmul.f32 %v397, %v396
    %v399 = vmul.f32 0.5, %v398
    %v400 = vsub.f32 1.5, %v399
    %v401 = vmul.f32 %v396, %v400
    %vm402 = vweird.f32 %v395
    %vm403 = vweird.f32 %v396
    %vm404 = vmor %vm402, %vm403
    %v405 = vsel %vm404, %v396, %v401
    %v406 = vand.u32 2147483647, %v270
    %v407 = vand.u32 2147483647, %v279
    %v408 = vand.u32 2147483647, %v288
    %v409 = vand.u32 2147483647, %v297
    %v411 = vrot.slane %v405, 1
    %v412 = vrot.slane %v405, 2
    %v413 = vrot.slane %v405, 3
    %v418 = vmul.f32 %v406, %v405
    %v419 = vmul.f32 %v407, %v411
    %v420 = vmul.f32 %v408, %v412
    %v421 = vmul.f32 %v409, %v413
    %v422 = vmax.f32 %v418, 0.0
    %v423 = vmax.f32 %v419, 0.0
    %v424 = vmax.f32 %v420, 0.0
    %v425 = vmax.f32 %v421, 0.0
    %v426 = vmin.f32 %v422, 1.0
    %v427 = vmin.f32 %v423, 1.0
    %v428 = vmin.f32 %v424, 1.0
    %v429 = vmin.f32 %v425, 1.0
    %v430 = vld [vmem:[%s1] sm:$0xf]
    %v431 = vlaneseq
    %v432 = vshrl.u32 %v431, 7
    %vm433 = vcmp.eq.s32.totalorder %v432, 0
    %v434 = vperm.slane %v430, 0
    %v435 = vperm.slane %v430, 1
    %v436 = vsel %vm433, %v434, %v435
    %s437 = sld [smem:[#allocation2]]
    %v438 = vstv %s437
    %v439 = vmul.f32 %v426, %v438
    %v440 = vmul.f32 %v427, %v438
    %v441 = vmul.f32 %v428, %v438
    %v442 = vmul.f32 %v429, %v438
    %s443 = sld [smem:[#allocation2 + $0x10]]
    %v444 = vstv %s443
    %v445 = vmul.f32 %v436, %v444
    %v447 = vrot.slane %v445, 1
    %v448 = vrot.slane %v445, 2
    %v449 = vrot.slane %v445, 3
    %v454 = vadd.f32 %v439, %v445
    %v455 = vadd.f32 %v440, %v447
    %v456 = vadd.f32 %v441, %v448
    %v457 = vadd.f32 %v442, %v449
    %s458 = sld [smem:[#allocation2 + $0x20]]
    %v459 = vstv %s458
    %v460 = vadd.f32 %v454, %v459
    %v461 = vadd.f32 %v455, %v459
    %v462 = vadd.f32 %v456, %v459
    %v463 = vadd.f32 %v457, %v459
    %v464 = vmul.f32 %v460, 0.01
    %v465 = vmul.f32 %v461, 0.01
    %v466 = vmul.f32 %v462, 0.01
    %v467 = vmul.f32 %v463, 0.01
    %v468 = vmax.f32 %v460, %v464
    %v469 = vmax.f32 %v461, %v465
    %v470 = vmax.f32 %v462, %v466
    %v471 = vmax.f32 %v463, %v467
    %s472 = sld [smem:[#allocation2 + $0x30]]
    %v473 = vstv %s472
    %v474 = vmul.f32 %v473, %v468
    %v475 = vmul.f32 %v473, %v469
    %v476 = vmul.f32 %v473, %v470
    %v477 = vmul.f32 %v473, %v471
    %v478 = vadd.f32 %v474, 0.0
    %v479 = vadd.f32 %v475, 0.0
    %v480 = vadd.f32 %v476, 0.0
    %v481 = vadd.f32 %v477, 0.0
    %s482 = sld [smem:[#allocation2 + $0x1]]
    %v483 = vstv %s482
    %v484 = vmul.f32 %v426, %v483
    %v485 = vmul.f32 %v427, %v483
    %v486 = vmul.f32 %v428, %v483
    %v487 = vmul.f32 %v429, %v483
    %s488 = sld [smem:[#allocation2 + $0x11]]
    %v489 = vstv %s488
    %v490 = vmul.f32 %v436, %v489
    %v492 = vrot.slane %v490, 1
    %v493 = vrot.slane %v490, 2
    %v494 = vrot.slane %v490, 3
    %v499 = vadd.f32 %v484, %v490
    %v500 = vadd.f32 %v485, %v492
    %v501 = vadd.f32 %v486, %v493
    %v502 = vadd.f32 %v487, %v494
    %s503 = sld [smem:[#allocation2 + $0x21]]
    %v504 = vstv %s503
    %v505 = vadd.f32 %v499, %v504
    %v506 = vadd.f32 %v500, %v504
    %v507 = vadd.f32 %v501, %v504
    %v508 = vadd.f32 %v502, %v504
    %v509 = vmul.f32 %v505, 0.01
    %v510 = vmul.f32 %v506, 0.01
    %v511 = vmul.f32 %v507, 0.01
    %v512 = vmul.f32 %v508, 0.01
    %v513 = vmax.f32 %v505, %v509
    %v514 = vmax.f32 %v506, %v510
    %v515 = vmax.f32 %v507, %v511
    %v516 = vmax.f32 %v508, %v512
    %s517 = sld [smem:[#allocation2 + $0x31]]
    %v518 = vstv %s517
    %v519 = vmul.f32 %v518, %v513
    %v520 = vmul.f32 %v518, %v514
    %v521 = vmul.f32 %v518, %v515
    %v522 = vmul.f32 %v518, %v516
    %v523 = vadd.f32 %v478, %v519
    %v524 = vadd.f32 %v479, %v520
    %v525 = vadd.f32 %v480, %v521
    %v526 = vadd.f32 %v481, %v522
    %s527 = sld [smem:[#allocation2 + $0x2]]
    %v528 = vstv %s527
    %v529 = vmul.f32 %v426, %v528
    %v530 = vmul.f32 %v427, %v528
    %v531 = vmul.f32 %v428, %v528
    %v532 = vmul.f32 %v429, %v528
    %s533 = sld [smem:[#allocation2 + $0x12]]
    %v534 = vstv %s533
    %v535 = vmul.f32 %v436, %v534
    %v537 = vrot.slane %v535, 1
    %v538 = vrot.slane %v535, 2
    %v539 = vrot.slane %v535, 3
    %v544 = vadd.f32 %v529, %v535
    %v545 = vadd.f32 %v530, %v537
    %v546 = vadd.f32 %v531, %v538
    %v547 = vadd.f32 %v532, %v539
    %s548 = sld [smem:[#allocation2 + $0x22]]
    %v549 = vstv %s548
    %v550 = vadd.f32 %v544, %v549
    %v551 = vadd.f32 %v545, %v549
    %v552 = vadd.f32 %v546, %v549
    %v553 = vadd.f32 %v547, %v549
    %v554 = vmul.f32 %v550, 0.01
    %v555 = vmul.f32 %v551, 0.01
    %v556 = vmul.f32 %v552, 0.01
    %v557 = vmul.f32 %v553, 0.01
    %v558 = vmax.f32 %v550, %v554
    %v559 = vmax.f32 %v551, %v555
    %v560 = vmax.f32 %v552, %v556
    %v561 = vmax.f32 %v553, %v557
    %s562 = sld [smem:[#allocation2 + $0x32]]
    %v563 = vstv %s562
    %v564 = vmul.f32 %v563, %v558
    %v565 = vmul.f32 %v563, %v559
    %v566 = vmul.f32 %v563, %v560
    %v567 = vmul.f32 %v563, %v561
    %v568 = vadd.f32 %v523, %v564
    %v569 = vadd.f32 %v524, %v565
    %v570 = vadd.f32 %v525, %v566
    %v571 = vadd.f32 %v526, %v567
    %s572 = sld [smem:[#allocation2 + $0x3]]
    %v573 = vstv %s572
    %v574 = vmul.f32 %v426, %v573
    %v575 = vmul.f32 %v427, %v573
    %v576 = vmul.f32 %v428, %v573
    %v577 = vmul.f32 %v429, %v573
    %s578 = sld [smem:[#allocation2 + $0x13]]
    %v579 = vstv %s578
    %v580 = vmul.f32 %v436, %v579
    %v582 = vrot.slane %v580, 1
    %v583 = vrot.slane %v580, 2
    %v584 = vrot.slane %v580, 3
    %v589 = vadd.f32 %v574, %v580
    %v590 = vadd.f32 %v575, %v582
    %v591 = vadd.f32 %v576, %v583
    %v592 = vadd.f32 %v577, %v584
    %s593 = sld [smem:[#allocation2 + $0x23]]
    %v594 = vstv %s593
    %v595 = vadd.f32 %v589, %v594
    %v596 = vadd.f32 %v590, %v594
    %v597 = vadd.f32 %v591, %v594
    %v598 = vadd.f32 %v592, %v594
    %v599 = vmul.f32 %v595, 0.01
    %v600 = vmul.f32 %v596, 0.01
    %v601 = vmul.f32 %v597, 0.01
    %v602 = vmul.f32 %v598, 0.01
    %v603 = vmax.f32 %v595, %v599
    %v604 = vmax.f32 %v596, %v600
    %v605 = vmax.f32 %v597, %v601
    %v606 = vmax.f32 %v598, %v602
    %s607 = sld [smem:[#allocation2 + $0x33]]
    %v608 = vstv %s607
    %v609 = vmul.f32 %v608, %v603
    %v610 = vmul.f32 %v608, %v604
    %v611 = vmul.f32 %v608, %v605
    %v612 = vmul.f32 %v608, %v606
    %v613 = vadd.f32 %v568, %v609
    %v614 = vadd.f32 %v569, %v610
    %v615 = vadd.f32 %v570, %v611
    %v616 = vadd.f32 %v571, %v612
    %s617 = sld [smem:[#allocation2 + $0x4]]
    %v618 = vstv %s617
    %v619 = vmul.f32 %v426, %v618
    %v620 = vmul.f32 %v427, %v618
    %v621 = vmul.f32 %v428, %v618
    %v622 = vmul.f32 %v429, %v618
    %s623 = sld [smem:[#allocation2 + $0x14]]
    %v624 = vstv %s623
    %v625 = vmul.f32 %v436, %v624
    %v627 = vrot.slane %v625, 1
    %v628 = vrot.slane %v625, 2
    %v629 = vrot.slane %v625, 3
    %v634 = vadd.f32 %v619, %v625
    %v635 = vadd.f32 %v620, %v627
    %v636 = vadd.f32 %v621, %v628
    %v637 = vadd.f32 %v622, %v629
    %s638 = sld [smem:[#allocation2 + $0x24]]
    %v639 = vstv %s638
    %v640 = vadd.f32 %v634, %v639
    %v641 = vadd.f32 %v635, %v639
    %v642 = vadd.f32 %v636, %v639
    %v643 = vadd.f32 %v637, %v639
    %v644 = vmul.f32 %v640, 0.01
    %v645 = vmul.f32 %v641, 0.01
    %v646 = vmul.f32 %v642, 0.01
    %v647 = vmul.f32 %v643, 0.01
    %v648 = vmax.f32 %v640, %v644
    %v649 = vmax.f32 %v641, %v645
    %v650 = vmax.f32 %v642, %v646
    %v651 = vmax.f32 %v643, %v647
    %s652 = sld [smem:[#allocation2 + $0x34]]
    %v653 = vstv %s652
    %v654 = vmul.f32 %v653, %v648
    %v655 = vmul.f32 %v653, %v649
    %v656 = vmul.f32 %v653, %v650
    %v657 = vmul.f32 %v653, %v651
    %v658 = vadd.f32 %v613, %v654
    %v659 = vadd.f32 %v614, %v655
    %v660 = vadd.f32 %v615, %v656
    %v661 = vadd.f32 %v616, %v657
    %s662 = sld [smem:[#allocation2 + $0x5]]
    %v663 = vstv %s662
    %v664 = vmul.f32 %v426, %v663
    %v665 = vmul.f32 %v427, %v663
    %v666 = vmul.f32 %v428, %v663
    %v667 = vmul.f32 %v429, %v663
    %s668 = sld [smem:[#allocation2 + $0x15]]
    %v669 = vstv %s668
    %v670 = vmul.f32 %v436, %v669
    %v672 = vrot.slane %v670, 1
    %v673 = vrot.slane %v670, 2
    %v674 = vrot.slane %v670, 3
    %v679 = vadd.f32 %v664, %v670
    %v680 = vadd.f32 %v665, %v672
    %v681 = vadd.f32 %v666, %v673
    %v682 = vadd.f32 %v667, %v674
    %s683 = sld [smem:[#allocation2 + $0x25]]
    %v684 = vstv %s683
    %v685 = vadd.f32 %v679, %v684
    %v686 = vadd.f32 %v680, %v684
    %v687 = vadd.f32 %v681, %v684
    %v688 = vadd.f32 %v682, %v684
    %v689 = vmul.f32 %v685, 0.01
    %v690 = vmul.f32 %v686, 0.01
    %v691 = vmul.f32 %v687, 0.01
    %v692 = vmul.f32 %v688, 0.01
    %v693 = vmax.f32 %v685, %v689
    %v694 = vmax.f32 %v686, %v690
    %v695 = vmax.f32 %v687, %v691
    %v696 = vmax.f32 %v688, %v692
    %s697 = sld [smem:[#allocation2 + $0x35]]
    %v698 = vstv %s697
    %v699 = vmul.f32 %v698, %v693
    %v700 = vmul.f32 %v698, %v694
    %v701 = vmul.f32 %v698, %v695
    %v702 = vmul.f32 %v698, %v696
    %v703 = vadd.f32 %v658, %v699
    %v704 = vadd.f32 %v659, %v700
    %v705 = vadd.f32 %v660, %v701
    %v706 = vadd.f32 %v661, %v702
    %s707 = sld [smem:[#allocation2 + $0x6]]
    %v708 = vstv %s707
    %v709 = vmul.f32 %v426, %v708
    %v710 = vmul.f32 %v427, %v708
    %v711 = vmul.f32 %v428, %v708
    %v712 = vmul.f32 %v429, %v708
    %s713 = sld [smem:[#allocation2 + $0x16]]
    %v714 = vstv %s713
    %v715 = vmul.f32 %v436, %v714
    %v717 = vrot.slane %v715, 1
    %v718 = vrot.slane %v715, 2
    %v719 = vrot.slane %v715, 3
    %v724 = vadd.f32 %v709, %v715
    %v725 = vadd.f32 %v710, %v717
    %v726 = vadd.f32 %v711, %v718
    %v727 = vadd.f32 %v712, %v719
    %s728 = sld [smem:[#allocation2 + $0x26]]
    %v729 = vstv %s728
    %v730 = vadd.f32 %v724, %v729
    %v731 = vadd.f32 %v725, %v729
    %v732 = vadd.f32 %v726, %v729
    %v733 = vadd.f32 %v727, %v729
    %v734 = vmul.f32 %v730, 0.01
    %v735 = vmul.f32 %v731, 0.01
    %v736 = vmul.f32 %v732, 0.01
    %v737 = vmul.f32 %v733, 0.01
    %v738 = vmax.f32 %v730, %v734
    %v739 = vmax.f32 %v731, %v735
    %v740 = vmax.f32 %v732, %v736
    %v741 = vmax.f32 %v733, %v737
    %s742 = sld [smem:[#allocation2 + $0x36]]
    %v743 = vstv %s742
    %v744 = vmul.f32 %v743, %v738
    %v745 = vmul.f32 %v743, %v739
    %v746 = vmul.f32 %v743, %v740
    %v747 = vmul.f32 %v743, %v741
    %v748 = vadd.f32 %v703, %v744
    %v749 = vadd.f32 %v704, %v745
    %v750 = vadd.f32 %v705, %v746
    %v751 = vadd.f32 %v706, %v747
    %s752 = sld [smem:[#allocation2 + $0x7]]
    %v753 = vstv %s752
    %v754 = vmul.f32 %v426, %v753
    %v755 = vmul.f32 %v427, %v753
    %v756 = vmul.f32 %v428, %v753
    %v757 = vmul.f32 %v429, %v753
    %s758 = sld [smem:[#allocation2 + $0x17]]
    %v759 = vstv %s758
    %v760 = vmul.f32 %v436, %v759
    %v762 = vrot.slane %v760, 1
    %v763 = vrot.slane %v760, 2
    %v764 = vrot.slane %v760, 3
    %v769 = vadd.f32 %v754, %v760
    %v770 = vadd.f32 %v755, %v762
    %v771 = vadd.f32 %v756, %v763
    %v772 = vadd.f32 %v757, %v764
    %s773 = sld [smem:[#allocation2 + $0x27]]
    %v774 = vstv %s773
    %v775 = vadd.f32 %v769, %v774
    %v776 = vadd.f32 %v770, %v774
    %v777 = vadd.f32 %v771, %v774
    %v778 = vadd.f32 %v772, %v774
    %v779 = vmul.f32 %v775, 0.01
    %v780 = vmul.f32 %v776, 0.01
    %v781 = vmul.f32 %v777, 0.01
    %v782 = vmul.f32 %v778, 0.01
    %v783 = vmax.f32 %v775, %v779
    %v784 = vmax.f32 %v776, %v780
    %v785 = vmax.f32 %v777, %v781
    %v786 = vmax.f32 %v778, %v782
    %s787 = sld [smem:[#allocation2 + $0x37]]
    %v788 = vstv %s787
    %v789 = vmul.f32 %v788, %v783
    %v790 = vmul.f32 %v788, %v784
    %v791 = vmul.f32 %v788, %v785
    %v792 = vmul.f32 %v788, %v786
    %v793 = vadd.f32 %v748, %v789
    %v794 = vadd.f32 %v749, %v790
    %v795 = vadd.f32 %v750, %v791
    %v796 = vadd.f32 %v751, %v792
    %s797 = sld [smem:[#allocation2 + $0x8]]
    %v798 = vstv %s797
    %v799 = vmul.f32 %v426, %v798
    %v800 = vmul.f32 %v427, %v798
    %v801 = vmul.f32 %v428, %v798
    %v802 = vmul.f32 %v429, %v798
    %s803 = sld [smem:[#allocation2 + $0x18]]
    %v804 = vstv %s803
    %v805 = vmul.f32 %v436, %v804
    %v807 = vrot.slane %v805, 1
    %v808 = vrot.slane %v805, 2
    %v809 = vrot.slane %v805, 3
    %v814 = vadd.f32 %v799, %v805
    %v815 = vadd.f32 %v800, %v807
    %v816 = vadd.f32 %v801, %v808
    %v817 = vadd.f32 %v802, %v809
    %s818 = sld [smem:[#allocation2 + $0x28]]
    %v819 = vstv %s818
    %v820 = vadd.f32 %v814, %v819
    %v821 = vadd.f32 %v815, %v819
    %v822 = vadd.f32 %v816, %v819
    %v823 = vadd.f32 %v817, %v819
    %v824 = vmul.f32 %v820, 0.01
    %v825 = vmul.f32 %v821, 0.01
    %v826 = vmul.f32 %v822, 0.01
    %v827 = vmul.f32 %v823, 0.01
    %v828 = vmax.f32 %v820, %v824
    %v829 = vmax.f32 %v821, %v825
    %v830 = vmax.f32 %v822, %v826
    %v831 = vmax.f32 %v823, %v827
    %s832 = sld [smem:[#allocation2 + $0x38]]
    %v833 = vstv %s832
    %v834 = vmul.f32 %v833, %v828
    %v835 = vmul.f32 %v833, %v829
    %v836 = vmul.f32 %v833, %v830
    %v837 = vmul.f32 %v833, %v831
    %v838 = vadd.f32 %v793, %v834
    %v839 = vadd.f32 %v794, %v835
    %v840 = vadd.f32 %v795, %v836
    %v841 = vadd.f32 %v796, %v837
    %s842 = sld [smem:[#allocation2 + $0x9]]
    %v843 = vstv %s842
    %v844 = vmul.f32 %v426, %v843
    %v845 = vmul.f32 %v427, %v843
    %v846 = vmul.f32 %v428, %v843
    %v847 = vmul.f32 %v429, %v843
    %s848 = sld [smem:[#allocation2 + $0x19]]
    %v849 = vstv %s848
    %v850 = vmul.f32 %v436, %v849
    %v852 = vrot.slane %v850, 1
    %v853 = vrot.slane %v850, 2
    %v854 = vrot.slane %v850, 3
    %v859 = vadd.f32 %v844, %v850
    %v860 = vadd.f32 %v845, %v852
    %v861 = vadd.f32 %v846, %v853
    %v862 = vadd.f32 %v847, %v854
    %s863 = sld [smem:[#allocation2 + $0x29]]
    %v864 = vstv %s863
    %v865 = vadd.f32 %v859, %v864
    %v866 = vadd.f32 %v860, %v864
    %v867 = vadd.f32 %v861, %v864
    %v868 = vadd.f32 %v862, %v864
    %v869 = vmul.f32 %v865, 0.01
    %v870 = vmul.f32 %v866, 0.01
    %v871 = vmul.f32 %v867, 0.01
    %v872 = vmul.f32 %v868, 0.01
    %v873 = vmax.f32 %v865, %v869
    %v874 = vmax.f32 %v866, %v870
    %v875 = vmax.f32 %v867, %v871
    %v876 = vmax.f32 %v868, %v872
    %s877 = sld [smem:[#allocation2 + $0x39]]
    %v878 = vstv %s877
    %v879 = vmul.f32 %v878, %v873
    %v880 = vmul.f32 %v878, %v874
    %v881 = vmul.f32 %v878, %v875
    %v882 = vmul.f32 %v878, %v876
    %v883 = vadd.f32 %v838, %v879
    %v884 = vadd.f32 %v839, %v880
    %v885 = vadd.f32 %v840, %v881
    %v886 = vadd.f32 %v841, %v882
    %s887 = sld [smem:[#allocation2 + $0xa]]
    %v888 = vstv %s887
    %v889 = vmul.f32 %v426, %v888
    %v890 = vmul.f32 %v427, %v888
    %v891 = vmul.f32 %v428, %v888
    %v892 = vmul.f32 %v429, %v888
    %s893 = sld [smem:[#allocation2 + $0x1a]]
    %v894 = vstv %s893
    %v895 = vmul.f32 %v436, %v894
    %v897 = vrot.slane %v895, 1
    %v898 = vrot.slane %v895, 2
    %v899 = vrot.slane %v895, 3
    %v904 = vadd.f32 %v889, %v895
    %v905 = vadd.f32 %v890, %v897
    %v906 = vadd.f32 %v891, %v898
    %v907 = vadd.f32 %v892, %v899
    %s908 = sld [smem:[#allocation2 + $0x2a]]
    %v909 = vstv %s908
    %v910 = vadd.f32 %v904, %v909
    %v911 = vadd.f32 %v905, %v909
    %v912 = vadd.f32 %v906, %v909
    %v913 = vadd.f32 %v907, %v909
    %v914 = vmul.f32 %v910, 0.01
    %v915 = vmul.f32 %v911, 0.01
    %v916 = vmul.f32 %v912, 0.01
    %v917 = vmul.f32 %v913, 0.01
    %v918 = vmax.f32 %v910, %v914
    %v919 = vmax.f32 %v911, %v915
    %v920 = vmax.f32 %v912, %v916
    %v921 = vmax.f32 %v913, %v917
    %s922 = sld [smem:[#allocation2 + $0x3a]]
    %v923 = vstv %s922
    %v924 = vmul.f32 %v923, %v918
    %v925 = vmul.f32 %v923, %v919
    %v926 = vmul.f32 %v923, %v920
    %v927 = vmul.f32 %v923, %v921
    %v928 = vadd.f32 %v883, %v924
    %v929 = vadd.f32 %v884, %v925
    %v930 = vadd.f32 %v885, %v926
    %v931 = vadd.f32 %v886, %v927
    %s932 = sld [smem:[#allocation2 + $0xb]]
    %v933 = vstv %s932
    %v934 = vmul.f32 %v426, %v933
    %v935 = vmul.f32 %v427, %v933
    %v936 = vmul.f32 %v428, %v933
    %v937 = vmul.f32 %v429, %v933
    %s938 = sld [smem:[#allocation2 + $0x1b]]
    %v939 = vstv %s938
    %v940 = vmul.f32 %v436, %v939
    %v942 = vrot.slane %v940, 1
    %v943 = vrot.slane %v940, 2
    %v944 = vrot.slane %v940, 3
    %v949 = vadd.f32 %v934, %v940
    %v950 = vadd.f32 %v935, %v942
    %v951 = vadd.f32 %v936, %v943
    %v952 = vadd.f32 %v937, %v944
    %s953 = sld [smem:[#allocation2 + $0x2b]]
    %v954 = vstv %s953
    %v955 = vadd.f32 %v949, %v954
    %v956 = vadd.f32 %v950, %v954
    %v957 = vadd.f32 %v951, %v954
    %v958 = vadd.f32 %v952, %v954
    %v959 = vmul.f32 %v955, 0.01
    %v960 = vmul.f32 %v956, 0.01
    %v961 = vmul.f32 %v957, 0.01
    %v962 = vmul.f32 %v958, 0.01
    %v963 = vmax.f32 %v955, %v959
    %v964 = vmax.f32 %v956, %v960
    %v965 = vmax.f32 %v957, %v961
    %v966 = vmax.f32 %v958, %v962
    %s967 = sld [smem:[#allocation2 + $0x3b]]
    %v968 = vstv %s967
    %v969 = vmul.f32 %v968, %v963
    %v970 = vmul.f32 %v968, %v964
    %v971 = vmul.f32 %v968, %v965
    %v972 = vmul.f32 %v968, %v966
    %v973 = vadd.f32 %v928, %v969
    %v974 = vadd.f32 %v929, %v970
    %v975 = vadd.f32 %v930, %v971
    %v976 = vadd.f32 %v931, %v972
    %s977 = sld [smem:[#allocation2 + $0xc]]
    %v978 = vstv %s977
    %v979 = vmul.f32 %v426, %v978
    %v980 = vmul.f32 %v427, %v978
    %v981 = vmul.f32 %v428, %v978
    %v982 = vmul.f32 %v429, %v978
    %s983 = sld [smem:[#allocation2 + $0x1c]]
    %v984 = vstv %s983
    %v985 = vmul.f32 %v436, %v984
    %v987 = vrot.slane %v985, 1
    %v988 = vrot.slane %v985, 2
    %v989 = vrot.slane %v985, 3
    %v994 = vadd.f32 %v979, %v985
    %v995 = vadd.f32 %v980, %v987
    %v996 = vadd.f32 %v981, %v988
    %v997 = vadd.f32 %v982, %v989
    %s998 = sld [smem:[#allocation2 + $0x2c]]
    %v999 = vstv %s998
    %v1000 = vadd.f32 %v994, %v999
    %v1001 = vadd.f32 %v995, %v999
    %v1002 = vadd.f32 %v996, %v999
    %v1003 = vadd.f32 %v997, %v999
    %v1004 = vmul.f32 %v1000, 0.01
    %v1005 = vmul.f32 %v1001, 0.01
    %v1006 = vmul.f32 %v1002, 0.01
    %v1007 = vmul.f32 %v1003, 0.01
    %v1008 = vmax.f32 %v1000, %v1004
    %v1009 = vmax.f32 %v1001, %v1005
    %v1010 = vmax.f32 %v1002, %v1006
    %v1011 = vmax.f32 %v1003, %v1007
    %s1012 = sld [smem:[#allocation2 + $0x3c]]
    %v1013 = vstv %s1012
    %v1014 = vmul.f32 %v1013, %v1008
    %v1015 = vmul.f32 %v1013, %v1009
    %v1016 = vmul.f32 %v1013, %v1010
    %v1017 = vmul.f32 %v1013, %v1011
    %v1018 = vadd.f32 %v973, %v1014
    %v1019 = vadd.f32 %v974, %v1015
    %v1020 = vadd.f32 %v975, %v1016
    %v1021 = vadd.f32 %v976, %v1017
    %s1022 = sld [smem:[#allocation2 + $0xd]]
    %v1023 = vstv %s1022
    %v1024 = vmul.f32 %v426, %v1023
    %v1025 = vmul.f32 %v427, %v1023
    %v1026 = vmul.f32 %v428, %v1023
    %v1027 = vmul.f32 %v429, %v1023
    %s1028 = sld [smem:[#allocation2 + $0x1d]]
    %v1029 = vstv %s1028
    %v1030 = vmul.f32 %v436, %v1029
    %v1032 = vrot.slane %v1030, 1
    %v1033 = vrot.slane %v1030, 2
    %v1034 = vrot.slane %v1030, 3
    %v1039 = vadd.f32 %v1024, %v1030
    %v1040 = vadd.f32 %v1025, %v1032
    %v1041 = vadd.f32 %v1026, %v1033
    %v1042 = vadd.f32 %v1027, %v1034
    %s1043 = sld [smem:[#allocation2 + $0x2d]]
    %v1044 = vstv %s1043
    %v1045 = vadd.f32 %v1039, %v1044
    %v1046 = vadd.f32 %v1040, %v1044
    %v1047 = vadd.f32 %v1041, %v1044
    %v1048 = vadd.f32 %v1042, %v1044
    %v1049 = vmul.f32 %v1045, 0.01
    %v1050 = vmul.f32 %v1046, 0.01
    %v1051 = vmul.f32 %v1047, 0.01
    %v1052 = vmul.f32 %v1048, 0.01
    %v1053 = vmax.f32 %v1045, %v1049
    %v1054 = vmax.f32 %v1046, %v1050
    %v1055 = vmax.f32 %v1047, %v1051
    %v1056 = vmax.f32 %v1048, %v1052
    %s1057 = sld [smem:[#allocation2 + $0x3d]]
    %v1058 = vstv %s1057
    %v1059 = vmul.f32 %v1058, %v1053
    %v1060 = vmul.f32 %v1058, %v1054
    %v1061 = vmul.f32 %v1058, %v1055
    %v1062 = vmul.f32 %v1058, %v1056
    %v1063 = vadd.f32 %v1018, %v1059
    %v1064 = vadd.f32 %v1019, %v1060
    %v1065 = vadd.f32 %v1020, %v1061
    %v1066 = vadd.f32 %v1021, %v1062
    %s1067 = sld [smem:[#allocation2 + $0xe]]
    %v1068 = vstv %s1067
    %v1069 = vmul.f32 %v426, %v1068
    %v1070 = vmul.f32 %v427, %v1068
    %v1071 = vmul.f32 %v428, %v1068
    %v1072 = vmul.f32 %v429, %v1068
    %s1073 = sld [smem:[#allocation2 + $0x1e]]
    %v1074 = vstv %s1073
    %v1075 = vmul.f32 %v436, %v1074
    %v1077 = vrot.slane %v1075, 1
    %v1078 = vrot.slane %v1075, 2
    %v1079 = vrot.slane %v1075, 3
    %v1084 = vadd.f32 %v1069, %v1075
    %v1085 = vadd.f32 %v1070, %v1077
    %v1086 = vadd.f32 %v1071, %v1078
    %v1087 = vadd.f32 %v1072, %v1079
    %s1088 = sld [smem:[#allocation2 + $0x2e]]
    %v1089 = vstv %s1088
    %v1090 = vadd.f32 %v1084, %v1089
    %v1091 = vadd.f32 %v1085, %v1089
    %v1092 = vadd.f32 %v1086, %v1089
    %v1093 = vadd.f32 %v1087, %v1089
    %v1094 = vmul.f32 %v1090, 0.01
    %v1095 = vmul.f32 %v1091, 0.01
    %v1096 = vmul.f32 %v1092, 0.01
    %v1097 = vmul.f32 %v1093, 0.01
    %v1098 = vmax.f32 %v1090, %v1094
    %v1099 = vmax.f32 %v1091, %v1095
    %v1100 = vmax.f32 %v1092, %v1096
    %v1101 = vmax.f32 %v1093, %v1097
    %s1102 = sld [smem:[#allocation2 + $0x3e]]
    %v1103 = vstv %s1102
    %v1104 = vmul.f32 %v1103, %v1098
    %v1105 = vmul.f32 %v1103, %v1099
    %v1106 = vmul.f32 %v1103, %v1100
    %v1107 = vmul.f32 %v1103, %v1101
    %v1108 = vadd.f32 %v1063, %v1104
    %v1109 = vadd.f32 %v1064, %v1105
    %v1110 = vadd.f32 %v1065, %v1106
    %v1111 = vadd.f32 %v1066, %v1107
    %s1112 = sld [smem:[#allocation2 + $0xf]]
    %v1113 = vstv %s1112
    %v1114 = vmul.f32 %v426, %v1113
    %v1115 = vmul.f32 %v427, %v1113
    %v1116 = vmul.f32 %v428, %v1113
    %v1117 = vmul.f32 %v429, %v1113
    %s1118 = sld [smem:[#allocation2 + $0x1f]]
    %v1119 = vstv %s1118
    %v1120 = vmul.f32 %v436, %v1119
    %v1122 = vrot.slane %v1120, 1
    %v1123 = vrot.slane %v1120, 2
    %v1124 = vrot.slane %v1120, 3
    %v1129 = vadd.f32 %v1114, %v1120
    %v1130 = vadd.f32 %v1115, %v1122
    %v1131 = vadd.f32 %v1116, %v1123
    %v1132 = vadd.f32 %v1117, %v1124
    %s1133 = sld [smem:[#allocation2 + $0x2f]]
    %v1134 = vstv %s1133
    %v1135 = vadd.f32 %v1129, %v1134
    %v1136 = vadd.f32 %v1130, %v1134
    %v1137 = vadd.f32 %v1131, %v1134
    %v1138 = vadd.f32 %v1132, %v1134
    %v1139 = vmul.f32 %v1135, 0.01
    %v1140 = vmul.f32 %v1136, 0.01
    %v1141 = vmul.f32 %v1137, 0.01
    %v1142 = vmul.f32 %v1138, 0.01
    %v1143 = vmax.f32 %v1135, %v1139
    %v1144 = vmax.f32 %v1136, %v1140
    %v1145 = vmax.f32 %v1137, %v1141
    %v1146 = vmax.f32 %v1138, %v1142
    %s1147 = sld [smem:[#allocation2 + $0x3f]]
    %v1148 = vstv %s1147
    %v1149 = vmul.f32 %v1148, %v1143
    %v1150 = vmul.f32 %v1148, %v1144
    %v1151 = vmul.f32 %v1148, %v1145
    %v1152 = vmul.f32 %v1148, %v1146
    %v1153 = vadd.f32 %v1108, %v1149
    %v1154 = vadd.f32 %v1109, %v1150
    %v1155 = vadd.f32 %v1110, %v1151
    %v1156 = vadd.f32 %v1111, %v1152
    %s1157 = sld [smem:[#allocation2 + $0x40]]
    %v1158 = vstv %s1157
    %v1159 = vadd.f32 %v1153, %v1158
    %v1160 = vadd.f32 %v1154, %v1158
    %v1161 = vadd.f32 %v1155, %v1158
    %v1162 = vadd.f32 %v1156, %v1158
    %v1163 = vxor.u32 %v1159, 2147483648
    %v1164 = vxor.u32 %v1160, 2147483648
    %v1165 = vxor.u32 %v1161, 2147483648
    %v1166 = vxor.u32 %v1162, 2147483648
    %v1167 = vmul.f32 %v1163, 1.442695
    %v1168 = vpow.pop %v1167
    %v1169 = vmul.f32 %v1164, 1.442695
    %v1170 = vpow.pop %v1169
    %v1171 = vmul.f32 %v1165, 1.442695
    %v1172 = vpow.pop %v1171
    %v1173 = vmul.f32 %v1166, 1.442695
    %v1174 = vpow.pop %v1173
    %v1175 = vadd.f32 %v1168, 1.0
    %v1176 = vadd.f32 %v1170, 1.0
    %v1177 = vadd.f32 %v1172, 1.0
    %v1178 = vadd.f32 %v1174, 1.0
    %v1179 = vrcp.pop %v1175
    %v1180 = vmul.f32 %v1175, %v1179
    %v1181 = vsub.f32 1.0, %v1180
    %v1182 = vmul.f32 %v1179, %v1181
    %v1183 = vadd.f32 %v1179, %v1182
    %vm1184 = vweird.f32 %v1175
    %vm1185 = vweird.f32 %v1179
    %vm1186 = vmor %vm1184, %vm1185
    %v1187 = vsel %vm1186, %v1179, %v1183
    %v1188 = vand.u32 2147483647, %v1175
    %vm1189 = vcmp.eq.f32.partialorder %v1188, 8.507059e+37
    %v1190 = vand.u32 %v1175, 2147483648
    %v1191 = vor.u32 1.1754944e-38, %v1190
    %v1192 = vsel %vm1189, %v1191, %v1187
    %v1193 = vmul.f32 1.0, %v1192
    %v1194 = vrcp.pop %v1176
    %v1195 = vmul.f32 %v1176, %v1194
    %v1196 = vsub.f32 1.0, %v1195
    %v1197 = vmul.f32 %v1194, %v1196
    %v1198 = vadd.f32 %v1194, %v1197
    %vm1199 = vweird.f32 %v1176
    %vm1200 = vweird.f32 %v1194
    %vm1201 = vmor %vm1199, %vm1200
    %v1202 = vsel %vm1201, %v1194, %v1198
    %v1203 = vand.u32 2147483647, %v1176
    %vm1204 = vcmp.eq.f32.partialorder %v1203, 8.507059e+37
    %v1205 = vand.u32 %v1176, 2147483648
    %v1206 = vor.u32 1.1754944e-38, %v1205
    %v1207 = vsel %vm1204, %v1206, %v1202
    %v1208 = vmul.f32 1.0, %v1207
    %v1209 = vrcp.pop %v1177
    %v1210 = vmul.f32 %v1177, %v1209
    %v1211 = vsub.f32 1.0, %v1210
    %v1212 = vmul.f32 %v1209, %v1211
    %v1213 = vadd.f32 %v1209, %v1212
    %vm1214 = vweird.f32 %v1177
    %vm1215 = vweird.f32 %v1209
    %vm1216 = vmor %vm1214, %vm1215
    %v1217 = vsel %vm1216, %v1209, %v1213
    %v1218 = vand.u32 2147483647, %v1177
    %vm1219 = vcmp.eq.f32.partialorder %v1218, 8.507059e+37
    %v1220 = vand.u32 %v1177, 2147483648
    %v1221 = vor.u32 1.1754944e-38, %v1220
    %v1222 = vsel %vm1219, %v1221, %v1217
    %v1223 = vmul.f32 1.0, %v1222
    %v1224 = vrcp.pop %v1178
    %v1225 = vmul.f32 %v1178, %v1224
    %v1226 = vsub.f32 1.0, %v1225
    %v1227 = vmul.f32 %v1224, %v1226
    %v1228 = vadd.f32 %v1224, %v1227
    %vm1229 = vweird.f32 %v1178
    %vm1230 = vweird.f32 %v1224
    %vm1231 = vmor %vm1229, %vm1230
    %v1232 = vsel %vm1231, %v1224, %v1228
    %v1233 = vand.u32 2147483647, %v1178
    %vm1234 = vcmp.eq.f32.partialorder %v1233, 8.507059e+37
    %v1235 = vand.u32 %v1178, 2147483648
    %v1236 = vor.u32 1.1754944e-38, %v1235
    %v1237 = vsel %vm1234, %v1236, %v1232
    %v1238 = vmul.f32 1.0, %v1237
    %v1239 = vmul.f32 %v1193, 0.7
    %v1240 = vmul.f32 %v1208, 0.7
    %v1241 = vmul.f32 %v1223, 0.7
    %v1242 = vmul.f32 %v1238, 0.7
    %v1243 = vxor.u32 %v430, 2147483648
    %v1244 = vmul.f32 %v1243, 1.442695
    %v1245 = vpow.pop %v1244
    %v1246 = vadd.f32 %v1245, 1.0
    %v1247 = vrcp.pop %v1246
    %v1248 = vmul.f32 %v1246, %v1247
    %v1249 = vsub.f32 1.0, %v1248
    %v1250 = vmul.f32 %v1247, %v1249
    %v1251 = vadd.f32 %v1247, %v1250
    %vm1252 = vweird.f32 %v1246
    %vm1253 = vweird.f32 %v1247
    %vm1254 = vmor %vm1252, %vm1253
    %v1255 = vsel %vm1254, %v1247, %v1251
    %v1256 = vand.u32 2147483647, %v1246
    %vm1257 = vcmp.eq.f32.partialorder %v1256, 8.507059e+37
    %v1258 = vand.u32 %v1246, 2147483648
    %v1259 = vor.u32 1.1754944e-38, %v1258
    %v1260 = vsel %vm1257, %v1259, %v1255
    %v1261 = vmul.f32 1.0, %v1260
    %v1262 = vmul.f32 %v1261, 0.3
    %v1263 = vperm.slane %v1262, 2
    %v1264 = vadd.f32 %v1239, %v1263
    %v1265 = vadd.f32 %v1240, %v1263
    %v1266 = vadd.f32 %v1241, %v1263
    %v1267 = vadd.f32 %v1242, %v1263
    %v1268 = vld [vmem:[%s2] sm:$0xf]
    %1270 = vset.pattern.permute.xlu0 0
    %1271 = vperm.xlu0 %1270, %v1268
    %v1272 = vpop.permute.xlu0 %1271
    %v1273 = vrot.slane %v1272, 1
    %v1274 = vrot.slane %v1272, 2
    %v1275 = vrot.slane %v1272, 3
    %v1280 = vmul.f32 %v1264, %v1272
    %v1281 = vmul.f32 %v1265, %v1273
    %v1282 = vmul.f32 %v1266, %v1274
    %v1283 = vmul.f32 %v1267, %v1275
    %v1288 = vrot.slane %v1281, 7
    %v1289 = vsel %vm346, %v1288, %v1280
    %v1290 = vrot.slane %v1282, 6
    %v1291 = vsel %vm348, %v1290, %v1289
    %v1292 = vrot.slane %v1283, 5
    %v1293 = vsel %vm350, %v1292, %v1291
    %vm1295 = vcmask 519168
    %v1296 = vsel %vm1295, %v1293, 0.0
    %v1297 = vrot.slane %v1296, 4
    %v1298 = vadd.f32 %v1296, %v1297
    %v1299 = vrot.slane %v1298, 2
    %v1300 = vadd.f32 %v1298, %v1299
    %v1301 = vrot.slane %v1300, 1
    %v1302 = vadd.f32 %v1300, %v1301
    %v1303 = vsub.f32 %v1302, %v1280
    %v1304 = vmul.f32 %v1303, 0.33333334
    %v1306 = vrot.slane %v430, 3
    %v1308 = vmul.f32 %v1280, %v1306
    %v1309 = vmul.f32 %v1304, %v1306
    %1311 = vrot.lane.b32.xlu0 %v1309, 64
    %v1312 = vpop.permute.xlu0 %1311
    %v1314 = vsel %vm261, %v1308, %v1312
    %1315 = vst [vmem:[%s5] sm:$0x1] %v1314
    // Predicated region
    $region26: #{temporal_causal_graph_forward.1} parent=1 // pred_check
      _
    $region27: #{temporal_causal_graph_forward.1} parent=1 // pred_check_branch
      %1317 = sbr.rel (0) target = $region29
    $region28: #{temporal_causal_graph_forward.1} parent=1 // pred_region
      _
    $region29: #{temporal_causal_graph_forward.1} parent=1 // pred_fallthru
      _
    // Predicated region
    $region30: #{temporal_causal_graph_forward.1} parent=1 // pred_check
      _
    $region31: #{temporal_causal_graph_forward.1} parent=1 // pred_check_branch
      %1319 = sbr.rel (0) target = $region33
    $region32: #{temporal_causal_graph_forward.1} parent=1 // pred_region
      _
    $region33: #{temporal_causal_graph_forward.1} parent=1 // pred_fallthru
      _
    %1320 = vsyncpa [#allocation3], 1

</llo_original>
